<compile_context>
chip_gen: v5e
topology: v5e:2x2
jax: 0.10.0
libtpu: 0.0.40
codegen_flags: <defaults>
</compile_context>

<pallas_src>
import jax
import jax.numpy as jnp
from jax.experimental import pallas as pl
from jax.experimental.pallas import tpu as pltpu


def _round_up(x, m):
    return (x + m - 1) // m * m


def _conv_bn_relu_kernel(x_ref, w_ref, shift_ref, o_ref):
    # x_ref:     (1, Hp, Wp, Cin)          bf16 whole padded image (resident across inner axes)
    # w_ref:     (KH, KW, Cin, CT)         bf16 conv weights with BN scale folded in
    # shift_ref: (1, CT)                   f32 BN shift (beta - mean * scale)
    # o_ref:     (1, TH, Wo8, CT)          f32 output row-tile / cout-tile
    kh, kw, cin, _ = w_ref.shape
    _, th, wo8, ct = o_ref.shape

    r = pl.program_id(2)                       # row-tile index
    row0 = pl.multiple_of(r * th, th)          # first output row of this tile

    acc = jnp.zeros((th * wo8, ct), dtype=jnp.float32)
    # Direct convolution: kh*kw shifted-window matmuls on the MXU (bf16 in, f32 acc).
    for i in range(kh):
        for j in range(kw):
            xs = x_ref[0, pl.ds(row0 + i, th), pl.ds(j, wo8), :]        # (th, wo8, cin) bf16
            acc = acc + jnp.dot(xs.reshape(th * wo8, cin), w_ref[i, j],
                                preferred_element_type=jnp.float32)

    y = jnp.maximum(acc + shift_ref[0], 0.0)                            # fused BN shift + ReLU
    o_ref[0] = y.reshape(th, wo8, ct).astype(o_ref.dtype)


def basic_conv2d(x_nchw, weight, gamma, beta, running_mean, running_var,
                 *, padding=1, eps=1e-3, block_h=8, cout_tile=128):
    """Conv2d(bias=False, stride=1) + BatchNorm2d(eval) + ReLU.

    x_nchw: (N, Cin, H, W)   weight: (Cout, Cin, KH, KW)   -> (N, Cout, H', W') float32
    """
    n, cin, h, w = x_nchw.shape
    cout, _, kh, kw = weight.shape
    ho = h + 2 * padding - kh + 1
    wo = w + 2 * padding - kw + 1

    # ---- BN (eval) folding: scale goes into the weights, shift stays as a bias ----
    scale = (gamma / jnp.sqrt(running_var + eps)).astype(jnp.float32)
    shift = (beta - running_mean * scale).astype(jnp.float32)

    # ---- Padded / tiled geometry ----
    cout_p = _round_up(cout, cout_tile)        # lane-dense output channels
    wo8 = _round_up(wo, 8)                     # sublane-aligned output width
    th = min(block_h, ho)                      # output rows per grid step
    ho_p = _round_up(ho, th)                   # row-tiled output height
    hp = ho_p + kh - 1                         # padded input height seen by the kernel
    wp = wo8 + kw - 1                          # padded input width seen by the kernel

    # ---- Weights: OIHW -> HWIO, fold BN scale, pad Cout, cast to bf16 ----
    w_hwio = jnp.transpose(weight, (2, 3, 1, 0)).astype(jnp.float32)       # (KH,KW,Cin,Cout)
    w_hwio = w_hwio * scale[None, None, None, :]
    w_hwio = jnp.pad(w_hwio, ((0, 0), (0, 0), (0, 0), (0, cout_p - cout)))
    w_hwio = w_hwio.astype(jnp.bfloat16)
    shift_p = jnp.pad(shift, (0, cout_p - cout)).reshape(1, cout_p)

    # ---- Input: NCHW -> NHWC, zero pad (conv halo + alignment), cast to bf16 ----
    x_nhwc = jnp.transpose(x_nchw, (0, 2, 3, 1)).astype(jnp.float32)
    x_pad = jnp.pad(
        x_nhwc,
        ((0, 0),
         (padding, hp - h - padding),
         (padding, wp - w - padding),
         (0, 0))).astype(jnp.bfloat16)

    grid = (n, cout_p // cout_tile, ho_p // th)

    out = pl.pallas_call(
        _conv_bn_relu_kernel,
        out_shape=jax.ShapeDtypeStruct((n, ho_p, wo8, cout_p), jnp.float32),
        grid_spec=pltpu.PrefetchScalarGridSpec(
            num_scalar_prefetch=0,
            grid=grid,
            in_specs=[
                # Whole padded image per batch element; index depends only on b -> resident
                # across the cout/row axes (no re-DMA per inner step).
                pl.BlockSpec((1, hp, wp, cin), lambda b, co, r: (b, 0, 0, 0)),
                # Weight tile over Cout; resident across row tiles.
                pl.BlockSpec((kh, kw, cin, cout_tile), lambda b, co, r: (0, 0, 0, co)),
                pl.BlockSpec((1, cout_tile), lambda b, co, r: (0, co)),
            ],
            out_specs=pl.BlockSpec((1, th, wo8, cout_tile),
                                   lambda b, co, r: (b, r, 0, co)),
        ),
        compiler_params=pltpu.CompilerParams(
            dimension_semantics=("parallel", "parallel", "parallel")),
    )(x_pad, w_hwio, shift_p)

    # Strip alignment padding and return NCHW float32 (module semantics).
    out = out[:, :ho, :wo, :cout]
    return jnp.transpose(out, (0, 3, 1, 2))


def _reference_f32(x, weight, gamma, beta, running_mean, running_var, *, padding=1, eps=1e-3):
    """Exact float32 module semantics (Conv -> BN(eval) -> ReLU)."""
    y = jax.lax.conv_general_dilated(
        x.astype(jnp.float32), weight.astype(jnp.float32),
        window_strides=(1, 1), padding=[(padding, padding), (padding, padding)],
        dimension_numbers=("NCHW", "OIHW", "NCHW"))
    scale = gamma / jnp.sqrt(running_var + eps)
    shift = beta - running_mean * scale
    y = y * scale[None, :, None, None] + shift[None, :, None, None]
    return jnp.maximum(y, 0.0)


def _reference_bf16_operands(x, weight, gamma, beta, running_mean, running_var,
                             *, padding=1, eps=1e-3):
    """Reference with the same bf16-rounded operands the kernel uses (f32 accumulation)."""
    scale = gamma / jnp.sqrt(running_var + eps)
    shift = beta - running_mean * scale
    w_folded = (weight * scale[:, None, None, None]).astype(jnp.bfloat16).astype(jnp.float32)
    x_r = x.astype(jnp.bfloat16).astype(jnp.float32)
    y = jax.lax.conv_general_dilated(
        x_r, w_folded, window_strides=(1, 1),
        padding=[(padding, padding), (padding, padding)],
        dimension_numbers=("NCHW", "OIHW", "NCHW"))
    y = y + shift[None, :, None, None]
    return jnp.maximum(y, 0.0)


if __name__ == "__main__":
    key = jax.random.PRNGKey(0)
    k_x, k_w, k_g, k_b, k_m, k_v = jax.random.split(key, 6)

    N, Cin, H, W = 2, 4, 16, 16
    Cout, KH, KW = 8, 3, 3
    PAD, EPS = 1, 1e-3

    x = jax.random.normal(k_x, (N, Cin, H, W), dtype=jnp.float32)
    weight = jax.random.normal(k_w, (Cout, Cin, KH, KW), dtype=jnp.float32) * 0.1
    gamma = 1.0 + 0.1 * jax.random.normal(k_g, (Cout,), dtype=jnp.float32)
    beta = 0.1 * jax.random.normal(k_b, (Cout,), dtype=jnp.float32)
    running_mean = 0.1 * jax.random.normal(k_m, (Cout,), dtype=jnp.float32)
    running_var = jnp.abs(1.0 + 0.1 * jax.random.normal(k_v, (Cout,), dtype=jnp.float32))

    out = basic_conv2d(x, weight, gamma, beta, running_mean, running_var,
                       padding=PAD, eps=EPS)
    out = jax.block_until_ready(out)
    assert out.shape == (N, Cout, H, W)

    # Loose check vs exact f32 module semantics (kernel uses bf16 MXU operands).
    ref32 = _reference_f32(x, weight, gamma, beta, running_mean, running_var,
                           padding=PAD, eps=EPS)
    assert jnp.allclose(out, ref32, atol=5e-2, rtol=5e-2), "mismatch vs f32 reference"

    # Tight check vs a reference using the same bf16-rounded operands (only accumulation
    # order differs).
    refbf = _reference_bf16_operands(x, weight, gamma, beta, running_mean, running_var,
                                     padding=PAD, eps=EPS)
    assert jnp.allclose(out, refbf, atol=2e-3, rtol=2e-3), "mismatch vs bf16-operand reference"

    print("KERNEL_OK")
</pallas_src>

<mosaic_0001>
module attributes {stable_mosaic.version = 11 : i64} {
  func.func @_conv_bn_relu_kernel(%arg0: i32, %arg1: i32, %arg2: i32, %arg3: memref<1x18x18x4xbf16, #tpu.memory_space<vmem>>, %arg4: memref<3x3x4x128xbf16, #tpu.memory_space<vmem>>, %arg5: memref<1x128xf32, #tpu.memory_space<vmem>>, %arg6: memref<1x8x16x128xf32, #tpu.memory_space<vmem>>) attributes {dimension_semantics = [#tpu.dimension_semantics<parallel>, #tpu.dimension_semantics<parallel>, #tpu.dimension_semantics<parallel>], iteration_bounds = array<i64: 2, 1, 2>, scalar_prefetch = 0 : i64, scratch_operands = 0 : i64, tpu.core_type = #tpu.core_type<tc>, window_params = [{transform_indices = @transform_0, window_bounds = array<i64: 1, 18, 18, 4>}, {transform_indices = @transform_1, window_bounds = array<i64: 3, 3, 4, 128>}, {transform_indices = @transform_2, window_bounds = array<i64: 1, 128>}, {transform_indices = @transform_3, window_bounds = array<i64: 1, 8, 16, 128>}]} {
    %c8_i32 = arith.constant 8 : i32
    %0 = arith.muli %arg2, %c8_i32 : i32
    %1 = tpu.assume_multiple %0, 8 : i32
    %cst = arith.constant 0.000000e+00 : f32
    %2 = vector.broadcast %cst : f32 to vector<128x128xf32>
    %c0_i32 = arith.constant 0 : i32
    %3 = arith.addi %1, %c0_i32 : i32
    %c0 = arith.constant 0 : index
    %4 = arith.index_cast %3 : i32 to index
    %c0_0 = arith.constant 0 : index
    %c0_1 = arith.constant 0 : index
    %5 = vector.load %arg3[%c0, %4, %c0_0, %c0_1] : memref<1x18x18x4xbf16, #tpu.memory_space<vmem>>, vector<1x8x16x4xbf16>
    %6 = vector.shape_cast %5 : vector<1x8x16x4xbf16> to vector<8x16x4xbf16>
    %7 = vector.shape_cast %6 : vector<8x16x4xbf16> to vector<128x4xbf16>
    %c0_2 = arith.constant 0 : index
    %c0_3 = arith.constant 0 : index
    %c0_4 = arith.constant 0 : index
    %c0_5 = arith.constant 0 : index
    %8 = vector.load %arg4[%c0_2, %c0_3, %c0_4, %c0_5] : memref<3x3x4x128xbf16, #tpu.memory_space<vmem>>, vector<1x1x4x128xbf16>
    %9 = vector.shape_cast %8 : vector<1x1x4x128xbf16> to vector<4x128xbf16>
    %cst_6 = arith.constant dense<0.000000e+00> : vector<128x128xf32>
    %10 = tpu.matmul %7, %9, %cst_6 {dimension_numbers = #tpu.dot_dimension_numbers<[1], [0], [0], [1], [0, 0, 1, 1], [], []>} : vector<128x4xbf16>, vector<4x128xbf16>, vector<128x128xf32> -> vector<128x128xf32>
    %11 = arith.addf %2, %10 : vector<128x128xf32>
    %c0_i32_7 = arith.constant 0 : i32
    %12 = arith.addi %1, %c0_i32_7 : i32
    %c0_8 = arith.constant 0 : index
    %13 = arith.index_cast %12 : i32 to index
    %c1 = arith.constant 1 : index
    %c0_9 = arith.constant 0 : index
    %14 = vector.load %arg3[%c0_8, %13, %c1, %c0_9] : memref<1x18x18x4xbf16, #tpu.memory_space<vmem>>, vector<1x8x16x4xbf16>
    %15 = vector.shape_cast %14 : vector<1x8x16x4xbf16> to vector<8x16x4xbf16>
    %16 = vector.shape_cast %15 : vector<8x16x4xbf16> to vector<128x4xbf16>
    %c0_10 = arith.constant 0 : index
    %c1_11 = arith.constant 1 : index
    %c0_12 = arith.constant 0 : index
    %c0_13 = arith.constant 0 : index
    %17 = vector.load %arg4[%c0_10, %c1_11, %c0_12, %c0_13] : memref<3x3x4x128xbf16, #tpu.memory_space<vmem>>, vector<1x1x4x128xbf16>
    %18 = vector.shape_cast %17 : vector<1x1x4x128xbf16> to vector<4x128xbf16>
    %cst_14 = arith.constant dense<0.000000e+00> : vector<128x128xf32>
    %19 = tpu.matmul %16, %18, %cst_14 {dimension_numbers = #tpu.dot_dimension_numbers<[1], [0], [0], [1], [0, 0, 1, 1], [], []>} : vector<128x4xbf16>, vector<4x128xbf16>, vector<128x128xf32> -> vector<128x128xf32>
    %20 = arith.addf %11, %19 : vector<128x128xf32>
    %c0_i32_15 = arith.constant 0 : i32
    %21 = arith.addi %1, %c0_i32_15 : i32
    %c0_16 = arith.constant 0 : index
    %22 = arith.index_cast %21 : i32 to index
    %c2 = arith.constant 2 : index
    %c0_17 = arith.constant 0 : index
    %23 = vector.load %arg3[%c0_16, %22, %c2, %c0_17] : memref<1x18x18x4xbf16, #tpu.memory_space<vmem>>, vector<1x8x16x4xbf16>
    %24 = vector.shape_cast %23 : vector<1x8x16x4xbf16> to vector<8x16x4xbf16>
    %25 = vector.shape_cast %24 : vector<8x16x4xbf16> to vector<128x4xbf16>
    %c0_18 = arith.constant 0 : index
    %c2_19 = arith.constant 2 : index
    %c0_20 = arith.constant 0 : index
    %c0_21 = arith.constant 0 : index
    %26 = vector.load %arg4[%c0_18, %c2_19, %c0_20, %c0_21] : memref<3x3x4x128xbf16, #tpu.memory_space<vmem>>, vector<1x1x4x128xbf16>
    %27 = vector.shape_cast %26 : vector<1x1x4x128xbf16> to vector<4x128xbf16>
    %cst_22 = arith.constant dense<0.000000e+00> : vector<128x128xf32>
    %28 = tpu.matmul %25, %27, %cst_22 {dimension_numbers = #tpu.dot_dimension_numbers<[1], [0], [0], [1], [0, 0, 1, 1], [], []>} : vector<128x4xbf16>, vector<4x128xbf16>, vector<128x128xf32> -> vector<128x128xf32>
    %29 = arith.addf %20, %28 : vector<128x128xf32>
    %c1_i32 = arith.constant 1 : i32
    %30 = arith.addi %1, %c1_i32 : i32
    %c0_23 = arith.constant 0 : index
    %31 = arith.index_cast %30 : i32 to index
    %c0_24 = arith.constant 0 : index
    %c0_25 = arith.constant 0 : index
    %32 = vector.load %arg3[%c0_23, %31, %c0_24, %c0_25] : memref<1x18x18x4xbf16, #tpu.memory_space<vmem>>, vector<1x8x16x4xbf16>
    %33 = vector.shape_cast %32 : vector<1x8x16x4xbf16> to vector<8x16x4xbf16>
    %34 = vector.shape_cast %33 : vector<8x16x4xbf16> to vector<128x4xbf16>
    %c1_26 = arith.constant 1 : index
    %c0_27 = arith.constant 0 : index
    %c0_28 = arith.constant 0 : index
    %c0_29 = arith.constant 0 : index
    %35 = vector.load %arg4[%c1_26, %c0_27, %c0_28, %c0_29] : memref<3x3x4x128xbf16, #tpu.memory_space<vmem>>, vector<1x1x4x128xbf16>
    %36 = vector.shape_cast %35 : vector<1x1x4x128xbf16> to vector<4x128xbf16>
    %cst_30 = arith.constant dense<0.000000e+00> : vector<128x128xf32>
    %37 = tpu.matmul %34, %36, %cst_30 {dimension_numbers = #tpu.dot_dimension_numbers<[1], [0], [0], [1], [0, 0, 1, 1], [], []>} : vector<128x4xbf16>, vector<4x128xbf16>, vector<128x128xf32> -> vector<128x128xf32>
    %38 = arith.addf %29, %37 : vector<128x128xf32>
    %c1_i32_31 = arith.constant 1 : i32
    %39 = arith.addi %1, %c1_i32_31 : i32
    %c0_32 = arith.constant 0 : index
    %40 = arith.index_cast %39 : i32 to index
    %c1_33 = arith.constant 1 : index
    %c0_34 = arith.constant 0 : index
    %41 = vector.load %arg3[%c0_32, %40, %c1_33, %c0_34] : memref<1x18x18x4xbf16, #tpu.memory_space<vmem>>, vector<1x8x16x4xbf16>
    %42 = vector.shape_cast %41 : vector<1x8x16x4xbf16> to vector<8x16x4xbf16>
    %43 = vector.shape_cast %42 : vector<8x16x4xbf16> to vector<128x4xbf16>
    %c1_35 = arith.constant 1 : index
    %c1_36 = arith.constant 1 : index
    %c0_37 = arith.constant 0 : index
    %c0_38 = arith.constant 0 : index
    %44 = vector.load %arg4[%c1_35, %c1_36, %c0_37, %c0_38] : memref<3x3x4x128xbf16, #tpu.memory_space<vmem>>, vector<1x1x4x128xbf16>
    %45 = vector.shape_cast %44 : vector<1x1x4x128xbf16> to vector<4x128xbf16>
    %cst_39 = arith.constant dense<0.000000e+00> : vector<128x128xf32>
    %46 = tpu.matmul %43, %45, %cst_39 {dimension_numbers = #tpu.dot_dimension_numbers<[1], [0], [0], [1], [0, 0, 1, 1], [], []>} : vector<128x4xbf16>, vector<4x128xbf16>, vector<128x128xf32> -> vector<128x128xf32>
    %47 = arith.addf %38, %46 : vector<128x128xf32>
    %c1_i32_40 = arith.constant 1 : i32
    %48 = arith.addi %1, %c1_i32_40 : i32
    %c0_41 = arith.constant 0 : index
    %49 = arith.index_cast %48 : i32 to index
    %c2_42 = arith.constant 2 : index
    %c0_43 = arith.constant 0 : index
    %50 = vector.load %arg3[%c0_41, %49, %c2_42, %c0_43] : memref<1x18x18x4xbf16, #tpu.memory_space<vmem>>, vector<1x8x16x4xbf16>
    %51 = vector.shape_cast %50 : vector<1x8x16x4xbf16> to vector<8x16x4xbf16>
    %52 = vector.shape_cast %51 : vector<8x16x4xbf16> to vector<128x4xbf16>
    %c1_44 = arith.constant 1 : index
    %c2_45 = arith.constant 2 : index
    %c0_46 = arith.constant 0 : index
    %c0_47 = arith.constant 0 : index
    %53 = vector.load %arg4[%c1_44, %c2_45, %c0_46, %c0_47] : memref<3x3x4x128xbf16, #tpu.memory_space<vmem>>, vector<1x1x4x128xbf16>
    %54 = vector.shape_cast %53 : vector<1x1x4x128xbf16> to vector<4x128xbf16>
    %cst_48 = arith.constant dense<0.000000e+00> : vector<128x128xf32>
    %55 = tpu.matmul %52, %54, %cst_48 {dimension_numbers = #tpu.dot_dimension_numbers<[1], [0], [0], [1], [0, 0, 1, 1], [], []>} : vector<128x4xbf16>, vector<4x128xbf16>, vector<128x128xf32> -> vector<128x128xf32>
    %56 = arith.addf %47, %55 : vector<128x128xf32>
    %c2_i32 = arith.constant 2 : i32
    %57 = arith.addi %1, %c2_i32 : i32
    %c0_49 = arith.constant 0 : index
    %58 = arith.index_cast %57 : i32 to index
    %c0_50 = arith.constant 0 : index
    %c0_51 = arith.constant 0 : index
    %59 = vector.load %arg3[%c0_49, %58, %c0_50, %c0_51] : memref<1x18x18x4xbf16, #tpu.memory_space<vmem>>, vector<1x8x16x4xbf16>
    %60 = vector.shape_cast %59 : vector<1x8x16x4xbf16> to vector<8x16x4xbf16>
    %61 = vector.shape_cast %60 : vector<8x16x4xbf16> to vector<128x4xbf16>
    %c2_52 = arith.constant 2 : index
    %c0_53 = arith.constant 0 : index
    %c0_54 = arith.constant 0 : index
    %c0_55 = arith.constant 0 : index
    %62 = vector.load %arg4[%c2_52, %c0_53, %c0_54, %c0_55] : memref<3x3x4x128xbf16, #tpu.memory_space<vmem>>, vector<1x1x4x128xbf16>
    %63 = vector.shape_cast %62 : vector<1x1x4x128xbf16> to vector<4x128xbf16>
    %cst_56 = arith.constant dense<0.000000e+00> : vector<128x128xf32>
    %64 = tpu.matmul %61, %63, %cst_56 {dimension_numbers = #tpu.dot_dimension_numbers<[1], [0], [0], [1], [0, 0, 1, 1], [], []>} : vector<128x4xbf16>, vector<4x128xbf16>, vector<128x128xf32> -> vector<128x128xf32>
    %65 = arith.addf %56, %64 : vector<128x128xf32>
    %c2_i32_57 = arith.constant 2 : i32
    %66 = arith.addi %1, %c2_i32_57 : i32
    %c0_58 = arith.constant 0 : index
    %67 = arith.index_cast %66 : i32 to index
    %c1_59 = arith.constant 1 : index
    %c0_60 = arith.constant 0 : index
    %68 = vector.load %arg3[%c0_58, %67, %c1_59, %c0_60] : memref<1x18x18x4xbf16, #tpu.memory_space<vmem>>, vector<1x8x16x4xbf16>
    %69 = vector.shape_cast %68 : vector<1x8x16x4xbf16> to vector<8x16x4xbf16>
    %70 = vector.shape_cast %69 : vector<8x16x4xbf16> to vector<128x4xbf16>
    %c2_61 = arith.constant 2 : index
    %c1_62 = arith.constant 1 : index
    %c0_63 = arith.constant 0 : index
    %c0_64 = arith.constant 0 : index
    %71 = vector.load %arg4[%c2_61, %c1_62, %c0_63, %c0_64] : memref<3x3x4x128xbf16, #tpu.memory_space<vmem>>, vector<1x1x4x128xbf16>
    %72 = vector.shape_cast %71 : vector<1x1x4x128xbf16> to vector<4x128xbf16>
    %cst_65 = arith.constant dense<0.000000e+00> : vector<128x128xf32>
    %73 = tpu.matmul %70, %72, %cst_65 {dimension_numbers = #tpu.dot_dimension_numbers<[1], [0], [0], [1], [0, 0, 1, 1], [], []>} : vector<128x4xbf16>, vector<4x128xbf16>, vector<128x128xf32> -> vector<128x128xf32>
    %74 = arith.addf %65, %73 : vector<128x128xf32>
    %c2_i32_66 = arith.constant 2 : i32
    %75 = arith.addi %1, %c2_i32_66 : i32
    %c0_67 = arith.constant 0 : index
    %76 = arith.index_cast %75 : i32 to index
    %c2_68 = arith.constant 2 : index
    %c0_69 = arith.constant 0 : index
    %77 = vector.load %arg3[%c0_67, %76, %c2_68, %c0_69] : memref<1x18x18x4xbf16, #tpu.memory_space<vmem>>, vector<1x8x16x4xbf16>
    %78 = vector.shape_cast %77 : vector<1x8x16x4xbf16> to vector<8x16x4xbf16>
    %79 = vector.shape_cast %78 : vector<8x16x4xbf16> to vector<128x4xbf16>
    %c2_70 = arith.constant 2 : index
    %c2_71 = arith.constant 2 : index
    %c0_72 = arith.constant 0 : index
    %c0_73 = arith.constant 0 : index
    %80 = vector.load %arg4[%c2_70, %c2_71, %c0_72, %c0_73] : memref<3x3x4x128xbf16, #tpu.memory_space<vmem>>, vector<1x1x4x128xbf16>
    %81 = vector.shape_cast %80 : vector<1x1x4x128xbf16> to vector<4x128xbf16>
    %cst_74 = arith.constant dense<0.000000e+00> : vector<128x128xf32>
    %82 = tpu.matmul %79, %81, %cst_74 {dimension_numbers = #tpu.dot_dimension_numbers<[1], [0], [0], [1], [0, 0, 1, 1], [], []>} : vector<128x4xbf16>, vector<4x128xbf16>, vector<128x128xf32> -> vector<128x128xf32>
    %83 = arith.addf %74, %82 : vector<128x128xf32>
    %c0_75 = arith.constant 0 : index
    %c0_76 = arith.constant 0 : index
    %84 = vector.load %arg5[%c0_75, %c0_76] : memref<1x128xf32, #tpu.memory_space<vmem>>, vector<1x128xf32>
    %85 = vector.shape_cast %84 : vector<1x128xf32> to vector<128xf32>
    %86 = vector.shape_cast %85 : vector<128xf32> to vector<1x128xf32>
    %87 = vector.broadcast %86 : vector<1x128xf32> to vector<128x128xf32>
    %88 = arith.addf %83, %87 : vector<128x128xf32>
    %cst_77 = arith.constant 0.000000e+00 : f32
    %89 = vector.broadcast %cst_77 : f32 to vector<128x128xf32>
    %90 = arith.maximumf %88, %89 : vector<128x128xf32>
    %91 = vector.shape_cast %90 : vector<128x128xf32> to vector<8x16x128xf32>
    %c0_78 = arith.constant 0 : index
    %c0_79 = arith.constant 0 : index
    %c0_80 = arith.constant 0 : index
    %c0_81 = arith.constant 0 : index
    %92 = vector.load %arg6[%c0_78, %c0_79, %c0_80, %c0_81] : memref<1x8x16x128xf32, #tpu.memory_space<vmem>>, vector<1x8x16x128xf32>
    %93 = vector.shape_cast %92 : vector<1x8x16x128xf32> to vector<8x16x128xf32>
    %94 = vector.shape_cast %91 : vector<8x16x128xf32> to vector<1x8x16x128xf32>
    tpu.vector_store %arg6[%c0_78, %c0_79, %c0_80, %c0_81], %94 {strides = array<i32>} : memref<1x8x16x128xf32, #tpu.memory_space<vmem>>, vector<1x8x16x128xf32>,
    return
  }
  func.func @transform_0(%arg0: i32, %arg1: i32, %arg2: i32) -> (i32, i32, i32, i32) {
    %c0_i32 = arith.constant 0 : i32
    %c0_i32_0 = arith.constant 0 : i32
    %c0_i32_1 = arith.constant 0 : i32
    %c0_i32_2 = arith.constant 0 : i32
    return %arg0, %c0_i32, %c0_i32_0, %c0_i32_1 : i32, i32, i32, i32
  }
  func.func @transform_1(%arg0: i32, %arg1: i32, %arg2: i32) -> (i32, i32, i32, i32) {
    %c0_i32 = arith.constant 0 : i32
    %c0_i32_0 = arith.constant 0 : i32
    %c0_i32_1 = arith.constant 0 : i32
    %c0_i32_2 = arith.constant 0 : i32
    return %c0_i32, %c0_i32_0, %c0_i32_1, %arg1 : i32, i32, i32, i32
  }
  func.func @transform_2(%arg0: i32, %arg1: i32, %arg2: i32) -> (i32, i32) {
    %c0_i32 = arith.constant 0 : i32
    %c0_i32_0 = arith.constant 0 : i32
    return %c0_i32, %arg1 : i32, i32
  }
  func.func @transform_3(%arg0: i32, %arg1: i32, %arg2: i32) -> (i32, i32, i32, i32) {
    %c0_i32 = arith.constant 0 : i32
    %c0_i32_0 = arith.constant 0 : i32
    return %arg0, %arg2, %c0_i32, %arg1 : i32, i32, i32, i32
  }
}

</mosaic_0001>

<llo_original>
// kernel: tpu_custom_call.1
$region0: #{tpu_custom_call.1}
  #allocation0 [shape = 'u32[]', space=smem, size = 0x4, offset = 0x4, fixed_abs, tag = 'smem constant byte address 0x4 - core index']
  #allocation1 [shape = 'u32[72,128]{1,0:T(1,128)}', space=vmem, size = 0x9000, scoped, tag = 'internal scratch']
  %s0 = inlined_call_operand.vmem [shape: bf16[2,18,18,4], index: 0, kind: input, shape index: {}]
  %s1 = inlined_call_operand.vmem [shape: bf16[3,3,4,128], index: 1, kind: input, shape index: {}]
  %s2 = inlined_call_operand.vmem [shape: f32[1,128], index: 2, kind: input, shape index: {}]
  %s3 = inlined_call_operand.hbm [shape: f32[2,16,16,128], index: 3, kind: output, shape index: {}]
  %s4 = sld [smem:[#allocation0]]
  $region45: #{tpu_custom_call.1} parent=0
    _
  %s6 = ssub.s32 1, %s4
  %s7 = scalar_select 0, %s6, %s4
  $region1: #{tpu_custom_call.1} parent=0
    #allocation2 [shape = 'u8[131072]{0}', space=vmem, size = 0x20000, scoped, tag = 'output window, operand 0']
    #allocation3 [shape = 's32[2]{0}', space=sflag, size = 0x8, scoped, tag = 'scoped memory for tpu_custom_call.1']
    %8 = vsyncpa [#allocation3], 0
    %s9 = scalar_lea.sflag [#allocation3], 1
    %10 = vsyncpa %s9, 0
    loop: start=0, step=1, limit=6
    $region2: #{tpu_custom_call.1} parent=1 // loop_pre_header
      _
    $region3: #{tpu_custom_call.1} parent=1 // loop_header
      %s12 = sphi 0, %s16
      %p13 = scmp.ge.s32.totalorder %s12, 6
      %s19 = sphi 0, %s38
      %s20 = sphi 0, %s34
      %s21 = sphi 0, %s30
      %s22 = sphi 0, %s19
      %s23 = sphi 0, %s20
      %s24 = sphi 0, %s21
      %s25 = sphi 0, %s22
      %s26 = sphi 0, %s23
      %s27 = sphi 0, %s24
      %s41 = sphi 0, %s43
      %s44 = sphi 0, %s41
      %s45 = sphi 0, %s44
      %s61 = sphi 0, %s45
      %s67 = sphi 0, %s69
      %s70 = sphi 0, %s67
      %s71 = sphi 0, %s70
      %s87 = sphi 0, %s71
      %s93 = sphi 0, %s95
      %s96 = sphi 0, %s93
      %s97 = sphi 0, %s96
      %s113 = sphi 0, %s97
      %s123 = sphi 0, %s125
      %s126 = sphi 0, %s123
      %s127 = sphi 0, %s126
      %s143 = sphi 0, %s127
    $region4: #{tpu_custom_call.1} parent=1 // loop_header_branch
      %15 = sbr.rel (%p13) target = $region8
    $region5: #{tpu_custom_call.1} parent=1 // loop_body
      %s17 = ssub.s32 %s12, 1
      %s18 = ssub.s32 %s12, 2
      %s28 = sadd.s32 1, %s21
      %p29 = scmp.ge.s32.totalorder %s28, 2
      %s30 = scalar_select %p29, 0, %s28
      %s31 = sadd.s32 1, %s20
      %s32 = scalar_select %p29, %s31, %s20
      %p33 = scmp.ge.s32.totalorder %s32, 1
      %s34 = scalar_select %p33, 0, %s32
      %s35 = sadd.s32 1, %s19
      %s36 = scalar_select %p33, %s35, %s19
      %p37 = scmp.ge.s32.totalorder %s36, 2
      %s38 = scalar_select %p37, 0, %s36
      %s39 = ssub.s32 %s19, %s38
      %p40 = scmp.eq.s32.totalorder %s39, 0
      %s42 = sadd.s32 %s41, 1
      %s43 = scalar_select %p40, %s41, %s42
      %p46 = pneg %p40
      %p47 = scmp.eq.s32.totalorder %s12, 3
      %p48 = por %p46, %p47
      %p49 = scmp.ne.s32.totalorder %s41, %s44
      %p50 = scmp.eq.s32.totalorder %s12, 0
      %p51 = por %p49, %p50
      %p52 = scmp.ne.s32.totalorder %s41, %s44
      %p53 = scmp.eq.s32.totalorder %s17, 3
      %p54 = por %p52, %p53
      %p55 = scmp.ne.s32.totalorder %s44, %s45
      %p56 = scmp.eq.s32.totalorder %s17, 0
      %p57 = por %p55, %p56
      %p58 = scmp.ne.s32.totalorder %s44, %s45
      %p59 = scmp.eq.s32.totalorder %s18, 3
      %p60 = por %p58, %p59
      %p62 = scmp.ne.s32.totalorder %s45, %s61
      %p63 = scmp.eq.s32.totalorder %s18, 0
      %p64 = por %p62, %p63
      %s65 = ssub.s32 %s20, %s34
      %p66 = scmp.eq.s32.totalorder %s65, 0
      %s68 = sadd.s32 %s67, 1
      %s69 = scalar_select %p66, %s67, %s68
      %p72 = pneg %p66
      %p73 = scmp.eq.s32.totalorder %s12, 3
      %p74 = por %p72, %p73
      %p75 = scmp.ne.s32.totalorder %s67, %s70
      %p76 = scmp.eq.s32.totalorder %s12, 0
      %p77 = por %p75, %p76
      %p78 = scmp.ne.s32.totalorder %s67, %s70
      %p79 = scmp.eq.s32.totalorder %s17, 3
      %p80 = por %p78, %p79
      %p81 = scmp.ne.s32.totalorder %s70, %s71
      %p82 = scmp.eq.s32.totalorder %s17, 0
      %p83 = por %p81, %p82
      %p84 = scmp.ne.s32.totalorder %s70, %s71
      %p85 = scmp.eq.s32.totalorder %s18, 3
      %p86 = por %p84, %p85
      %p88 = scmp.ne.s32.totalorder %s71, %s87
      %p89 = scmp.eq.s32.totalorder %s18, 0
      %p90 = por %p88, %p89
      %s91 = ssub.s32 %s20, %s34
      %p92 = scmp.eq.s32.totalorder %s91, 0
      %s94 = sadd.s32 %s93, 1
      %s95 = scalar_select %p92, %s93, %s94
      %p98 = pneg %p92
      %p99 = scmp.eq.s32.totalorder %s12, 3
      %p100 = por %p98, %p99
      %p101 = scmp.ne.s32.totalorder %s93, %s96
      %p102 = scmp.eq.s32.totalorder %s12, 0
      %p103 = por %p101, %p102
      %p104 = scmp.ne.s32.totalorder %s93, %s96
      %p105 = scmp.eq.s32.totalorder %s17, 3
      %p106 = por %p104, %p105
      %p107 = scmp.ne.s32.totalorder %s96, %s97
      %p108 = scmp.eq.s32.totalorder %s17, 0
      %p109 = por %p107, %p108
      %p110 = scmp.ne.s32.totalorder %s96, %s97
      %p111 = scmp.eq.s32.totalorder %s18, 3
      %p112 = por %p110, %p111
      %p114 = scmp.ne.s32.totalorder %s97, %s113
      %p115 = scmp.eq.s32.totalorder %s18, 0
      %p116 = por %p114, %p115
      %s117 = ssub.s32 %s19, %s38
      %s118 = ssub.s32 %s21, %s30
      %s119 = sor.u32 %s117, %s118
      %s120 = ssub.s32 %s20, %s34
      %s121 = sor.u32 %s119, %s120
      %p122 = scmp.eq.s32.totalorder %s121, 0
      %s124 = sadd.s32 %s123, 1
      %s125 = scalar_select %p122, %s123, %s124
      %p128 = pneg %p122
      %p129 = scmp.eq.s32.totalorder %s12, 3
      %p130 = por %p128, %p129
      %p131 = scmp.ne.s32.totalorder %s123, %s126
      %p132 = scmp.eq.s32.totalorder %s12, 0
      %p133 = por %p131, %p132
      %p134 = scmp.ne.s32.totalorder %s123, %s126
      %p135 = scmp.eq.s32.totalorder %s17, 3
      %p136 = por %p134, %p135
      %p137 = scmp.ne.s32.totalorder %s126, %s127
      %p138 = scmp.eq.s32.totalorder %s17, 0
      %p139 = por %p137, %p138
      %p140 = scmp.ne.s32.totalorder %s126, %s127
      %p141 = scmp.eq.s32.totalorder %s18, 3
      %p142 = por %p140, %p141
      %p144 = scmp.ne.s32.totalorder %s127, %s143
      %p145 = scmp.eq.s32.totalorder %s18, 0
      %p146 = por %p144, %p145
      %p147 = scmp.le.s32.totalorder 1, %s12
      %p148 = scmp.lt.s32.totalorder %s12, 5
      %p149 = pnand %p147, %p148
      %p150 = pneg %p149
      // Predicated region
      $region9: #{tpu_custom_call.1} parent=5 // pred_check
        _
      $region10: #{tpu_custom_call.1} parent=5 // pred_check_branch
        %152 = sbr.rel (%p149) target = $region12
      $region11: #{tpu_custom_call.1} parent=5 // pred_region
        %s153 = ssub.s32 %s12, 1
        // Predicated region
        $region13: #{tpu_custom_call.1} parent=11 // pred_check
          %p154 = pneg %p83
        $region14: #{tpu_custom_call.1} parent=11 // pred_check_branch
          %156 = sbr.rel (%p154) target = $region16
        $region15: #{tpu_custom_call.1} parent=11 // pred_region
          %p157 = scmp.lt.s32.totalorder %s23, 0
          %s158 = scalar_select %p157, %s23, 0
          %s159 = smul.addr %s158, 2
          %s160 = scalar_lea.vmem %s1, %s159
        $region16: #{tpu_custom_call.1} parent=11 // pred_fallthru
          _
        // Predicated region
        $region17: #{tpu_custom_call.1} parent=11 // pred_check
          %p161 = pneg %p109
        $region18: #{tpu_custom_call.1} parent=11 // pred_check_branch
          %163 = sbr.rel (%p161) target = $region20
        $region19: #{tpu_custom_call.1} parent=11 // pred_region
          %p164 = scmp.lt.s32.totalorder %s23, 0
          %s165 = scalar_select %p164, %s23, 0
          %s166 = scalar_lea.vmem %s2, %s165
        $region20: #{tpu_custom_call.1} parent=11 // pred_fallthru
          _
      $region12: #{tpu_custom_call.1} parent=5 // pred_fallthru
        _
      %p167 = scmp.lt.s32.totalorder %s12, 4
      // Predicated region
      $region21: #{tpu_custom_call.1} parent=5 // pred_check
        %p168 = pneg %p167
      $region22: #{tpu_custom_call.1} parent=5 // pred_check_branch
        %170 = sbr.rel (%p168) target = $region24
      $region23: #{tpu_custom_call.1} parent=5 // pred_region
        // Predicated region
        $region25: #{tpu_custom_call.1} parent=23 // pred_check
          %p171 = pneg %p51
        $region26: #{tpu_custom_call.1} parent=23 // pred_check_branch
          %173 = sbr.rel (%p171) target = $region28
        $region27: #{tpu_custom_call.1} parent=23 // pred_region
          %p174 = scmp.lt.s32.totalorder %s19, 1
          %s175 = scalar_select %p174, %s19, 1
          %s176 = smul.addr %s175, 54
          %s177 = smul.addr %s176, 4
          %s178 = scalar_lea.vmem %s0, %s177
        $region28: #{tpu_custom_call.1} parent=23 // pred_fallthru
          _
      $region24: #{tpu_custom_call.1} parent=5 // pred_fallthru
        _
      %p179 = scmp.le.s32.totalorder 1, %s12
      %p180 = scmp.lt.s32.totalorder %s12, 5
      %p181 = pnand %p179, %p180
      %p182 = pneg %p181
      // Predicated region
      $region29: #{tpu_custom_call.1} parent=5 // pred_check
        _
      $region30: #{tpu_custom_call.1} parent=5 // pred_check_branch
        %184 = sbr.rel (%p181) target = $region32
      $region31: #{tpu_custom_call.1} parent=5 // pred_region
        %s185 = ssub.s32 %s12, 1
        %p186 = scmp.lt.s32.totalorder %s22, 1
        %s187 = scalar_select %p186, %s22, 1
        %s188 = smul.addr %s187, 54
        %s189 = smul.addr %s188, 4
        %s190 = scalar_lea.vmem %s0, %s189
        %p191 = pneg %p57
        %p192 = pneg %p54
        %p193 = scmp.lt.s32.totalorder %s23, 0
        %s194 = scalar_select %p193, %s23, 0
        %s195 = smul.addr %s194, 2
        %s196 = scalar_lea.vmem %s1, %s195
        %p197 = pneg %p83
        %p198 = pneg %p80
        %p199 = scmp.lt.s32.totalorder %s23, 0
        %s200 = scalar_select %p199, %s23, 0
        %s201 = scalar_lea.vmem %s2, %s200
        %p202 = pneg %p109
        %p203 = pneg %p106
        %p204 = pneg %p139
        %p205 = pneg %p136
        %s206 = sand.u32 %s126, 1
        %s207 = scalar_lea.sflag [#allocation3], %s206
        %s208 = sand.u32 %s126, 1
        %s209 = smul.addr %s208, 128
        %s210 = scalar_lea.vmem [#allocation2], %s209
        %p211 = scmp.lt.s32.totalorder %s22, 1
        %s212 = scalar_select %p211, %s22, 1
        %s213 = smul.addr %s212, 54
        %s214 = smul.addr %s213, 4
        %s215 = scalar_lea.vmem %s0, %s214
        %p216 = scmp.lt.s32.totalorder %s23, 0
        %s217 = scalar_select %p216, %s23, 0
        %s218 = smul.addr %s217, 2
        %s219 = scalar_lea.vmem %s1, %s218
        %p220 = scmp.lt.s32.totalorder %s23, 0
        %s221 = scalar_select %p220, %s23, 0
        %s222 = scalar_lea.vmem %s2, %s221
        %s223 = smul.u32 8, %s24
        %s225 = smul.u32 %s24, 8
        %s226 = smul.u32 %s225, 3
        %s227 = smul.addr %s226, 4
        %s228 = scalar_lea.vmem %s215, %s227
        %v229 = vld [vmem:[%s228] sm:$0xf]
        %v230 = vld [vmem:[%s228 + $0x4] sm:$0xf]
        %v231 = vld [vmem:[%s228 + $0xc] sm:$0xf]
        %v232 = vld [vmem:[%s228 + $0x10] sm:$0xf]
        %v233 = vld [vmem:[%s228 + $0x18] sm:$0xf]
        %v234 = vld [vmem:[%s228 + $0x1c] sm:$0xf]
        %v235 = vld [vmem:[%s228 + $0x24] sm:$0xf]
        %v236 = vld [vmem:[%s228 + $0x28] sm:$0xf]
        %v237 = vld [vmem:[%s228 + $0x30] sm:$0xf]
        %v238 = vld [vmem:[%s228 + $0x34] sm:$0xf]
        %v239 = vld [vmem:[%s228 + $0x3c] sm:$0xf]
        %v240 = vld [vmem:[%s228 + $0x40] sm:$0xf]
        %v241 = vld [vmem:[%s228 + $0x48] sm:$0xf]
        %v242 = vld [vmem:[%s228 + $0x4c] sm:$0xf]
        %v243 = vld [vmem:[%s228 + $0x54] sm:$0xf]
        %v244 = vld [vmem:[%s228 + $0x58] sm:$0xf]
        %v245 = vld [vmem:[%s219] sm:$0x3]
        %v246 = vld [vmem:[%s228 + $0x8] sm:$0x1]
        %v247 = vld [vmem:[%s228 + $0x14] sm:$0x1]
        %v248 = vld [vmem:[%s228 + $0x20] sm:$0x1]
        %v249 = vld [vmem:[%s228 + $0x2c] sm:$0x1]
        %v250 = vld [vmem:[%s228 + $0x38] sm:$0x1]
        %v251 = vld [vmem:[%s228 + $0x44] sm:$0x1]
        %v252 = vld [vmem:[%s228 + $0x50] sm:$0x1]
        %v253 = vld [vmem:[%s228 + $0x5c] sm:$0x1]
        %vm254 = vsmask.f32 3328
        %vm255 = vsmask.f32 7440
        %vm256 = vmor %vm254, %vm255
        %v258 = vshrl.u32 %v229, 16
        %v260 = vrot.slane %v258, 4
        %v261 = vshll.u32 %v229, 16
        %v263 = vrot.slane %v261, 5
        %v264 = vor.u32 %v260, %v263
        %v265 = vrot.slane %v264, 4
        %v267 = vshll.u32 %v230, 16
        %v269 = vrot.slane %v267, 5
        %v270 = vsel %vm256, %v265, %v269
        %v271 = vshrl.u32 %v230, 16
        %v273 = vrot.slane %v271, 4
        %v274 = vor.u32 %v273, %v269
        %v275 = vrot.slane %v274, 4
        %v277 = vshll.u32 %v246, 16
        %v279 = vrot.slane %v277, 5
        %v280 = vsel %vm256, %v275, %v279
        %v282 = vshrl.u32 %v231, 16
        %v284 = vrot.slane %v282, 4
        %v285 = vshll.u32 %v231, 16
        %v287 = vrot.slane %v285, 5
        %v288 = vor.u32 %v284, %v287
        %v289 = vrot.slane %v288, 4
        %v291 = vshll.u32 %v232, 16
        %v293 = vrot.slane %v291, 5
        %v294 = vsel %vm256, %v289, %v293
        %v295 = vshrl.u32 %v232, 16
        %v297 = vrot.slane %v295, 4
        %v298 = vor.u32 %v297, %v293
        %v299 = vrot.slane %v298, 4
        %v301 = vshll.u32 %v247, 16
        %v303 = vrot.slane %v301, 5
        %v304 = vsel %vm256, %v299, %v303
        %v306 = vshrl.u32 %v233, 16
        %v308 = vrot.slane %v306, 4
        %v309 = vshll.u32 %v233, 16
        %v311 = vrot.slane %v309, 5
        %v312 = vor.u32 %v308, %v311
        %v313 = vrot.slane %v312, 4
        %v315 = vshll.u32 %v234, 16
        %v317 = vrot.slane %v315, 5
        %v318 = vsel %vm256, %v313, %v317
        %v319 = vshrl.u32 %v234, 16
        %v321 = vrot.slane %v319, 4
        %v322 = vor.u32 %v321, %v317
        %v323 = vrot.slane %v322, 4
        %v325 = vshll.u32 %v248, 16
        %v327 = vrot.slane %v325, 5
        %v328 = vsel %vm256, %v323, %v327
        %v330 = vshrl.u32 %v235, 16
        %v332 = vrot.slane %v330, 4
        %v333 = vshll.u32 %v235, 16
        %v335 = vrot.slane %v333, 5
        %v336 = vor.u32 %v332, %v335
        %v337 = vrot.slane %v336, 4
        %v339 = vshll.u32 %v236, 16
        %v341 = vrot.slane %v339, 5
        %v342 = vsel %vm256, %v337, %v341
        %v343 = vshrl.u32 %v236, 16
        %v345 = vrot.slane %v343, 4
        %v346 = vor.u32 %v345, %v341
        %v347 = vrot.slane %v346, 4
        %v349 = vshll.u32 %v249, 16
        %v351 = vrot.slane %v349, 5
        %v352 = vsel %vm256, %v347, %v351
        %v354 = vshrl.u32 %v237, 16
        %v356 = vrot.slane %v354, 4
        %v357 = vshll.u32 %v237, 16
        %v359 = vrot.slane %v357, 5
        %v360 = vor.u32 %v356, %v359
        %v361 = vrot.slane %v360, 4
        %v363 = vshll.u32 %v238, 16
        %v365 = vrot.slane %v363, 5
        %v366 = vsel %vm256, %v361, %v365
        %v367 = vshrl.u32 %v238, 16
        %v369 = vrot.slane %v367, 4
        %v370 = vor.u32 %v369, %v365
        %v371 = vrot.slane %v370, 4
        %v373 = vshll.u32 %v250, 16
        %v375 = vrot.slane %v373, 5
        %v376 = vsel %vm256, %v371, %v375
        %v378 = vshrl.u32 %v239, 16
        %v380 = vrot.slane %v378, 4
        %v381 = vshll.u32 %v239, 16
        %v383 = vrot.slane %v381, 5
        %v384 = vor.u32 %v380, %v383
        %v385 = vrot.slane %v384, 4
        %v387 = vshll.u32 %v240, 16
        %v389 = vrot.slane %v387, 5
        %v390 = vsel %vm256, %v385, %v389
        %v391 = vshrl.u32 %v240, 16
        %v393 = vrot.slane %v391, 4
        %v394 = vor.u32 %v393, %v389
        %v395 = vrot.slane %v394, 4
        %v397 = vshll.u32 %v251, 16
        %v399 = vrot.slane %v397, 5
        %v400 = vsel %vm256, %v395, %v399
        %v402 = vshrl.u32 %v241, 16
        %v404 = vrot.slane %v402, 4
        %v405 = vshll.u32 %v241, 16
        %v407 = vrot.slane %v405, 5
        %v408 = vor.u32 %v404, %v407
        %v409 = vrot.slane %v408, 4
        %v411 = vshll.u32 %v242, 16
        %v413 = vrot.slane %v411, 5
        %v414 = vsel %vm256, %v409, %v413
        %v415 = vshrl.u32 %v242, 16
        %v417 = vrot.slane %v415, 4
        %v418 = vor.u32 %v417, %v413
        %v419 = vrot.slane %v418, 4
        %v421 = vshll.u32 %v252, 16
        %v423 = vrot.slane %v421, 5
        %v424 = vsel %vm256, %v419, %v423
        %v426 = vshrl.u32 %v243, 16
        %v428 = vrot.slane %v426, 4
        %v429 = vshll.u32 %v243, 16
        %v431 = vrot.slane %v429, 5
        %v432 = vor.u32 %v428, %v431
        %v433 = vrot.slane %v432, 4
        %v435 = vshll.u32 %v244, 16
        %v437 = vrot.slane %v435, 5
        %v438 = vsel %vm256, %v433, %v437
        %v439 = vshrl.u32 %v244, 16
        %v441 = vrot.slane %v439, 4
        %v442 = vor.u32 %v441, %v437
        %v443 = vrot.slane %v442, 4
        %v445 = vshll.u32 %v253, 16
        %v447 = vrot.slane %v445, 5
        %v448 = vsel %vm256, %v443, %v447
        %s449 = scalar_lea.vmem %s219, 2
        %v450 = vld [vmem:[%s449] sm:$0x3]
        %v451 = vunpack.c.l.b16 %v270
        %v452 = vunpack.c.l.b16 %v280
        %v453 = vunpack.c.l.b16 %v294
        %v454 = vunpack.c.l.b16 %v304
        %v455 = vunpack.c.l.b16 %v318
        %v456 = vunpack.c.l.b16 %v328
        %v457 = vunpack.c.l.b16 %v342
        %v458 = vunpack.c.l.b16 %v352
        %v459 = vunpack.c.l.b16 %v366
        %v460 = vunpack.c.l.b16 %v376
        %v461 = vunpack.c.l.b16 %v390
        %v462 = vunpack.c.l.b16 %v400
        %v463 = vunpack.c.l.b16 %v414
        %v464 = vunpack.c.l.b16 %v424
        %v465 = vunpack.c.l.b16 %v438
        %v466 = vunpack.c.l.b16 %v448
        %v467 = vpack.c.b16 %v452, %v451
        %v468 = vpack.c.b16 %v454, %v453
        %v469 = vpack.c.b16 %v456, %v455
        %v470 = vpack.c.b16 %v458, %v457
        %v471 = vpack.c.b16 %v460, %v459
        %v472 = vpack.c.b16 %v462, %v461
        %v473 = vpack.c.b16 %v464, %v463
        %v474 = vpack.c.b16 %v466, %v465
        %vm475 = vcmask 31744
        %v477 = vsel %vm475, %v467, 0
        %v480 = vsel %vm475, %v468, 0
        %v483 = vsel %vm475, %v469, 0
        %v486 = vsel %vm475, %v470, 0
        %v489 = vsel %vm475, %v471, 0
        %v492 = vsel %vm475, %v472, 0
        %v495 = vsel %vm475, %v473, 0
        %v498 = vsel %vm475, %v474, 0
        %vm500 = vcmask 1041408
        %v502 = vsel %vm500, %v450, 0
        %504 = vmatpush.bf16.msra.mxu0 0
        %505 = vmatpush.bf16.msra.mxu0 0
        %506 = vmatpush.bf16.msra.mxu0 0
        %507 = vmatpush.bf16.msra.mxu0 0
        %508 = vmatpush.bf16.msra.mxu0 0
        %509 = vmatpush.bf16.msra.mxu0 0
        %510 = vmatpush.bf16.msra.mxu0 0
        %511 = vmatpush.bf16.msra.mxu0 %v502
        %512 = vmatmul.bf16.gmra.mxu0 %v477
        %v513 = vpop.f32.mrf.mxu0
        %v514 = vadd.f32 0.0, %v513
        %v515 = vpop.f32.mrf.mxu0
        %v516 = vadd.f32 0.0, %v515
        %517 = vmatmul.bf16.gmra.mxu0 %v480
        %v518 = vpop.f32.mrf.mxu0
        %v519 = vadd.f32 0.0, %v518
        %v520 = vpop.f32.mrf.mxu0
        %v521 = vadd.f32 0.0, %v520
        %522 = vmatmul.bf16.gmra.mxu0 %v483
        %v523 = vpop.f32.mrf.mxu0
        %v524 = vadd.f32 0.0, %v523
        %v525 = vpop.f32.mrf.mxu0
        %v526 = vadd.f32 0.0, %v525
        %527 = vmatmul.bf16.gmra.mxu0 %v486
        %v528 = vpop.f32.mrf.mxu0
        %v529 = vadd.f32 0.0, %v528
        %v530 = vpop.f32.mrf.mxu0
        %v531 = vadd.f32 0.0, %v530
        %532 = vmatmul.bf16.gmra.mxu0 %v489
        %v533 = vpop.f32.mrf.mxu0
        %v534 = vadd.f32 0.0, %v533
        %v535 = vpop.f32.mrf.mxu0
        %v536 = vadd.f32 0.0, %v535
        %537 = vmatmul.bf16.gmra.mxu0 %v492
        %v538 = vpop.f32.mrf.mxu0
        %v539 = vadd.f32 0.0, %v538
        %v540 = vpop.f32.mrf.mxu0
        %v541 = vadd.f32 0.0, %v540
        %542 = vmatmul.bf16.gmra.mxu0 %v495
        %v543 = vpop.f32.mrf.mxu0
        %v544 = vadd.f32 0.0, %v543
        %v545 = vpop.f32.mrf.mxu0
        %v546 = vadd.f32 0.0, %v545
        %547 = vmatmul.bf16.gmra.mxu0 %v498
        %v548 = vpop.f32.mrf.mxu0
        %v549 = vadd.f32 0.0, %v548
        %v550 = vpop.f32.mrf.mxu0
        %v551 = vadd.f32 0.0, %v550
        %552 = vdwg.mxu0
        %v569 = vunpack.c.l.b16 %v229
        %v570 = vunpack.c.l.b16 %v230
        %v571 = vunpack.c.l.b16 %v231
        %v572 = vunpack.c.l.b16 %v232
        %v573 = vunpack.c.l.b16 %v233
        %v574 = vunpack.c.l.b16 %v234
        %v575 = vunpack.c.l.b16 %v235
        %v576 = vunpack.c.l.b16 %v236
        %v577 = vunpack.c.l.b16 %v237
        %v578 = vunpack.c.l.b16 %v238
        %v579 = vunpack.c.l.b16 %v239
        %v580 = vunpack.c.l.b16 %v240
        %v581 = vunpack.c.l.b16 %v241
        %v582 = vunpack.c.l.b16 %v242
        %v583 = vunpack.c.l.b16 %v243
        %v584 = vunpack.c.l.b16 %v244
        %v585 = vpack.c.b16 %v570, %v569
        %v586 = vpack.c.b16 %v572, %v571
        %v587 = vpack.c.b16 %v574, %v573
        %v588 = vpack.c.b16 %v576, %v575
        %v589 = vpack.c.b16 %v578, %v577
        %v590 = vpack.c.b16 %v580, %v579
        %v591 = vpack.c.b16 %v582, %v581
        %v592 = vpack.c.b16 %v584, %v583
        %v594 = vsel %vm475, %v585, 0
        %v597 = vsel %vm475, %v586, 0
        %v600 = vsel %vm475, %v587, 0
        %v603 = vsel %vm475, %v588, 0
        %v606 = vsel %vm475, %v589, 0
        %v609 = vsel %vm475, %v590, 0
        %v612 = vsel %vm475, %v591, 0
        %v615 = vsel %vm475, %v592, 0
        %v618 = vsel %vm500, %v245, 0
        %620 = vmatpush.bf16.msra.mxu0 0
        %621 = vmatpush.bf16.msra.mxu0 0
        %622 = vmatpush.bf16.msra.mxu0 0
        %623 = vmatpush.bf16.msra.mxu0 0
        %624 = vmatpush.bf16.msra.mxu0 0
        %625 = vmatpush.bf16.msra.mxu0 0
        %626 = vmatpush.bf16.msra.mxu0 0
        %627 = vmatpush.bf16.msra.mxu0 %v618
        %628 = vmatmul.bf16.gmra.mxu0 %v594
        %v629 = vpop.f32.mrf.mxu0
        %v630 = vadd.f32 %v514, %v629
        %v631 = vpop.f32.mrf.mxu0
        %v632 = vadd.f32 %v516, %v631
        %633 = vmatmul.bf16.gmra.mxu0 %v597
        %v634 = vpop.f32.mrf.mxu0
        %v635 = vadd.f32 %v519, %v634
        %v636 = vpop.f32.mrf.mxu0
        %v637 = vadd.f32 %v521, %v636
        %638 = vmatmul.bf16.gmra.mxu0 %v600
        %v639 = vpop.f32.mrf.mxu0
        %v640 = vadd.f32 %v524, %v639
        %v641 = vpop.f32.mrf.mxu0
        %v642 = vadd.f32 %v526, %v641
        %643 = vmatmul.bf16.gmra.mxu0 %v603
        %v644 = vpop.f32.mrf.mxu0
        %v645 = vadd.f32 %v529, %v644
        %v646 = vpop.f32.mrf.mxu0
        %v647 = vadd.f32 %v531, %v646
        %648 = vmatmul.bf16.gmra.mxu0 %v606
        %v649 = vpop.f32.mrf.mxu0
        %v650 = vadd.f32 %v534, %v649
        %v651 = vpop.f32.mrf.mxu0
        %v652 = vadd.f32 %v536, %v651
        %653 = vmatmul.bf16.gmra.mxu0 %v609
        %v654 = vpop.f32.mrf.mxu0
        %v655 = vadd.f32 %v539, %v654
        %v656 = vpop.f32.mrf.mxu0
        %v657 = vadd.f32 %v541, %v656
        %658 = vmatmul.bf16.gmra.mxu0 %v612
        %v659 = vpop.f32.mrf.mxu0
        %v660 = vadd.f32 %v544, %v659
        %v661 = vpop.f32.mrf.mxu0
        %v662 = vadd.f32 %v546, %v661
        %663 = vmatmul.bf16.gmra.mxu0 %v615
        %v664 = vpop.f32.mrf.mxu0
        %v665 = vadd.f32 %v549, %v664
        %v666 = vpop.f32.mrf.mxu0
        %v667 = vadd.f32 %v551, %v666
        %668 = vdwg.mxu0
        %v669 = vld [vmem:[%s228] sm:$0xe]
        %v670 = vld [vmem:[%s228 + $0xc] sm:$0xe]
        %v671 = vld [vmem:[%s228 + $0x18] sm:$0xe]
        %v672 = vld [vmem:[%s228 + $0x24] sm:$0xe]
        %v673 = vld [vmem:[%s228 + $0x30] sm:$0xe]
        %v674 = vld [vmem:[%s228 + $0x3c] sm:$0xe]
        %v675 = vld [vmem:[%s228 + $0x48] sm:$0xe]
        %v676 = vld [vmem:[%s228 + $0x54] sm:$0xe]
        %vm693 = vcmask 1042432
        %vm694 = vcmask 1046532
        %vm695 = vmor %vm693, %vm694
        %v696 = vrot.slane %v669, 5
        %v697 = vrot.slane %v696, 4
        %v698 = vrot.slane %v230, 5
        %v699 = vsel %vm695, %v697, %v698
        %v700 = vrot.slane %v698, 4
        %v701 = vrot.slane %v246, 5
        %v702 = vsel %vm695, %v700, %v701
        %v703 = vrot.slane %v670, 5
        %v704 = vrot.slane %v703, 4
        %v705 = vrot.slane %v232, 5
        %v706 = vsel %vm695, %v704, %v705
        %v707 = vrot.slane %v705, 4
        %v708 = vrot.slane %v247, 5
        %v709 = vsel %vm695, %v707, %v708
        %v710 = vrot.slane %v671, 5
        %v711 = vrot.slane %v710, 4
        %v712 = vrot.slane %v234, 5
        %v713 = vsel %vm695, %v711, %v712
        %v714 = vrot.slane %v712, 4
        %v715 = vrot.slane %v248, 5
        %v716 = vsel %vm695, %v714, %v715
        %v717 = vrot.slane %v672, 5
        %v718 = vrot.slane %v717, 4
        %v719 = vrot.slane %v236, 5
        %v720 = vsel %vm695, %v718, %v719
        %v721 = vrot.slane %v719, 4
        %v722 = vrot.slane %v249, 5
        %v723 = vsel %vm695, %v721, %v722
        %v724 = vrot.slane %v673, 5
        %v725 = vrot.slane %v724, 4
        %v726 = vrot.slane %v238, 5
        %v727 = vsel %vm695, %v725, %v726
        %v728 = vrot.slane %v726, 4
        %v729 = vrot.slane %v250, 5
        %v730 = vsel %vm695, %v728, %v729
        %v731 = vrot.slane %v674, 5
        %v732 = vrot.slane %v731, 4
        %v733 = vrot.slane %v240, 5
        %v734 = vsel %vm695, %v732, %v733
        %v735 = vrot.slane %v733, 4
        %v736 = vrot.slane %v251, 5
        %v737 = vsel %vm695, %v735, %v736
        %v738 = vrot.slane %v675, 5
        %v739 = vrot.slane %v738, 4
        %v740 = vrot.slane %v242, 5
        %v741 = vsel %vm695, %v739, %v740
        %v742 = vrot.slane %v740, 4
        %v743 = vrot.slane %v252, 5
        %v744 = vsel %vm695, %v742, %v743
        %v745 = vrot.slane %v676, 5
        %v746 = vrot.slane %v745, 4
        %v747 = vrot.slane %v244, 5
        %v748 = vsel %vm695, %v746, %v747
        %v749 = vrot.slane %v747, 4
        %v750 = vrot.slane %v253, 5
        %v751 = vsel %vm695, %v749, %v750
        %s752 = scalar_lea.vmem %s219, 4
        %v753 = vld [vmem:[%s752] sm:$0x3]
        %v754 = vunpack.c.l.b16 %v699
        %v755 = vunpack.c.l.b16 %v702
        %v756 = vunpack.c.l.b16 %v706
        %v757 = vunpack.c.l.b16 %v709
        %v758 = vunpack.c.l.b16 %v713
        %v759 = vunpack.c.l.b16 %v716
        %v760 = vunpack.c.l.b16 %v720
        %v761 = vunpack.c.l.b16 %v723
        %v762 = vunpack.c.l.b16 %v727
        %v763 = vunpack.c.l.b16 %v730
        %v764 = vunpack.c.l.b16 %v734
        %v765 = vunpack.c.l.b16 %v737
        %v766 = vunpack.c.l.b16 %v741
        %v767 = vunpack.c.l.b16 %v744
        %v768 = vunpack.c.l.b16 %v748
        %v769 = vunpack.c.l.b16 %v751
        %v770 = vpack.c.b16 %v755, %v754
        %v771 = vpack.c.b16 %v757, %v756
        %v772 = vpack.c.b16 %v759, %v758
        %v773 = vpack.c.b16 %v761, %v760
        %v774 = vpack.c.b16 %v763, %v762
        %v775 = vpack.c.b16 %v765, %v764
        %v776 = vpack.c.b16 %v767, %v766
        %v777 = vpack.c.b16 %v769, %v768
        %v779 = vsel %vm475, %v770, 0
        %v782 = vsel %vm475, %v771, 0
        %v785 = vsel %vm475, %v772, 0
        %v788 = vsel %vm475, %v773, 0
        %v791 = vsel %vm475, %v774, 0
        %v794 = vsel %vm475, %v775, 0
        %v797 = vsel %vm475, %v776, 0
        %v800 = vsel %vm475, %v777, 0
        %v803 = vsel %vm500, %v753, 0
        %805 = vmatpush.bf16.msra.mxu0 0
        %806 = vmatpush.bf16.msra.mxu0 0
        %807 = vmatpush.bf16.msra.mxu0 0
        %808 = vmatpush.bf16.msra.mxu0 0
        %809 = vmatpush.bf16.msra.mxu0 0
        %810 = vmatpush.bf16.msra.mxu0 0
        %811 = vmatpush.bf16.msra.mxu0 0
        %812 = vmatpush.bf16.msra.mxu0 %v803
        %813 = vmatmul.bf16.gmra.mxu0 %v779
        %v814 = vpop.f32.mrf.mxu0
        %v815 = vadd.f32 0.0, %v814
        %v816 = vpop.f32.mrf.mxu0
        %v817 = vadd.f32 0.0, %v816
        %818 = vmatmul.bf16.gmra.mxu0 %v782
        %v819 = vpop.f32.mrf.mxu0
        %v820 = vadd.f32 0.0, %v819
        %v821 = vpop.f32.mrf.mxu0
        %v822 = vadd.f32 0.0, %v821
        %823 = vmatmul.bf16.gmra.mxu0 %v785
        %v824 = vpop.f32.mrf.mxu0
        %v825 = vadd.f32 0.0, %v824
        %v826 = vpop.f32.mrf.mxu0
        %v827 = vadd.f32 0.0, %v826
        %828 = vmatmul.bf16.gmra.mxu0 %v788
        %v829 = vpop.f32.mrf.mxu0
        %v830 = vadd.f32 0.0, %v829
        %v831 = vpop.f32.mrf.mxu0
        %v832 = vadd.f32 0.0, %v831
        %833 = vmatmul.bf16.gmra.mxu0 %v791
        %v834 = vpop.f32.mrf.mxu0
        %v835 = vadd.f32 0.0, %v834
        %v836 = vpop.f32.mrf.mxu0
        %v837 = vadd.f32 0.0, %v836
        %838 = vmatmul.bf16.gmra.mxu0 %v794
        %v839 = vpop.f32.mrf.mxu0
        %v840 = vadd.f32 0.0, %v839
        %v841 = vpop.f32.mrf.mxu0
        %v842 = vadd.f32 0.0, %v841
        %843 = vmatmul.bf16.gmra.mxu0 %v797
        %v844 = vpop.f32.mrf.mxu0
        %v845 = vadd.f32 0.0, %v844
        %v846 = vpop.f32.mrf.mxu0
        %v847 = vadd.f32 0.0, %v846
        %848 = vmatmul.bf16.gmra.mxu0 %v800
        %v849 = vpop.f32.mrf.mxu0
        %v850 = vadd.f32 0.0, %v849
        %v851 = vpop.f32.mrf.mxu0
        %v852 = vadd.f32 0.0, %v851
        %853 = vdwg.mxu0
        %v854 = vadd.f32 %v630, %v815
        %v855 = vadd.f32 %v632, %v817
        %v856 = vadd.f32 %v635, %v820
        %v857 = vadd.f32 %v637, %v822
        %v858 = vadd.f32 %v640, %v825
        %v859 = vadd.f32 %v642, %v827
        %v860 = vadd.f32 %v645, %v830
        %v861 = vadd.f32 %v647, %v832
        %v862 = vadd.f32 %v650, %v835
        %v863 = vadd.f32 %v652, %v837
        %v864 = vadd.f32 %v655, %v840
        %v865 = vadd.f32 %v657, %v842
        %v866 = vadd.f32 %v660, %v845
        %v867 = vadd.f32 %v662, %v847
        %v868 = vadd.f32 %v665, %v850
        %v869 = vadd.f32 %v667, %v852
        %s870 = sadd.s32 %s225, 1
        %s871 = smul.u32 %s870, 3
        %s872 = smul.addr %s871, 4
        %s873 = scalar_lea.vmem %s215, %s872
        %v874 = vld [vmem:[%s873] sm:$0xf]
        %v875 = vld [vmem:[%s873 + $0x4] sm:$0xf]
        %v876 = vld [vmem:[%s873 + $0xc] sm:$0xf]
        %v877 = vld [vmem:[%s873 + $0x10] sm:$0xf]
        %v878 = vld [vmem:[%s873 + $0x18] sm:$0xf]
        %v879 = vld [vmem:[%s873 + $0x1c] sm:$0xf]
        %v880 = vld [vmem:[%s873 + $0x24] sm:$0xf]
        %v881 = vld [vmem:[%s873 + $0x28] sm:$0xf]
        %v882 = vld [vmem:[%s873 + $0x30] sm:$0xf]
        %v883 = vld [vmem:[%s873 + $0x34] sm:$0xf]
        %v884 = vld [vmem:[%s873 + $0x3c] sm:$0xf]
        %v885 = vld [vmem:[%s873 + $0x40] sm:$0xf]
        %v886 = vld [vmem:[%s873 + $0x48] sm:$0xf]
        %v887 = vld [vmem:[%s873 + $0x4c] sm:$0xf]
        %v888 = vld [vmem:[%s873 + $0x54] sm:$0xf]
        %v889 = vld [vmem:[%s873 + $0x58] sm:$0xf]
        %s890 = scalar_lea.vmem %s219, 6
        %v891 = vld [vmem:[%s890] sm:$0x3]
        %v908 = vunpack.c.l.b16 %v874
        %v909 = vunpack.c.l.b16 %v875
        %v910 = vunpack.c.l.b16 %v876
        %v911 = vunpack.c.l.b16 %v877
        %v912 = vunpack.c.l.b16 %v878
        %v913 = vunpack.c.l.b16 %v879
        %v914 = vunpack.c.l.b16 %v880
        %v915 = vunpack.c.l.b16 %v881
        %v916 = vunpack.c.l.b16 %v882
        %v917 = vunpack.c.l.b16 %v883
        %v918 = vunpack.c.l.b16 %v884
        %v919 = vunpack.c.l.b16 %v885
        %v920 = vunpack.c.l.b16 %v886
        %v921 = vunpack.c.l.b16 %v887
        %v922 = vunpack.c.l.b16 %v888
        %v923 = vunpack.c.l.b16 %v889
        %v924 = vpack.c.b16 %v909, %v908
        %v925 = vpack.c.b16 %v911, %v910
        %v926 = vpack.c.b16 %v913, %v912
        %v927 = vpack.c.b16 %v915, %v914
        %v928 = vpack.c.b16 %v917, %v916
        %v929 = vpack.c.b16 %v919, %v918
        %v930 = vpack.c.b16 %v921, %v920
        %v931 = vpack.c.b16 %v923, %v922
        %v933 = vsel %vm475, %v924, 0
        %v936 = vsel %vm475, %v925, 0
        %v939 = vsel %vm475, %v926, 0
        %v942 = vsel %vm475, %v927, 0
        %v945 = vsel %vm475, %v928, 0
        %v948 = vsel %vm475, %v929, 0
        %v951 = vsel %vm475, %v930, 0
        %v954 = vsel %vm475, %v931, 0
        %v957 = vsel %vm500, %v891, 0
        %959 = vmatpush.bf16.msra.mxu0 0
        %960 = vmatpush.bf16.msra.mxu0 0
        %961 = vmatpush.bf16.msra.mxu0 0
        %962 = vmatpush.bf16.msra.mxu0 0
        %963 = vmatpush.bf16.msra.mxu0 0
        %964 = vmatpush.bf16.msra.mxu0 0
        %965 = vmatpush.bf16.msra.mxu0 0
        %966 = vmatpush.bf16.msra.mxu0 %v957
        %967 = vmatmul.bf16.gmra.mxu0 %v933
        %v968 = vpop.f32.mrf.mxu0
        %v969 = vadd.f32 0.0, %v968
        %v970 = vpop.f32.mrf.mxu0
        %v971 = vadd.f32 0.0, %v970
        %972 = vmatmul.bf16.gmra.mxu0 %v936
        %v973 = vpop.f32.mrf.mxu0
        %v974 = vadd.f32 0.0, %v973
        %v975 = vpop.f32.mrf.mxu0
        %v976 = vadd.f32 0.0, %v975
        %977 = vmatmul.bf16.gmra.mxu0 %v939
        %v978 = vpop.f32.mrf.mxu0
        %v979 = vadd.f32 0.0, %v978
        %v980 = vpop.f32.mrf.mxu0
        %v981 = vadd.f32 0.0, %v980
        %982 = vmatmul.bf16.gmra.mxu0 %v942
        %v983 = vpop.f32.mrf.mxu0
        %v984 = vadd.f32 0.0, %v983
        %v985 = vpop.f32.mrf.mxu0
        %v986 = vadd.f32 0.0, %v985
        %987 = vmatmul.bf16.gmra.mxu0 %v945
        %v988 = vpop.f32.mrf.mxu0
        %v989 = vadd.f32 0.0, %v988
        %v990 = vpop.f32.mrf.mxu0
        %v991 = vadd.f32 0.0, %v990
        %992 = vmatmul.bf16.gmra.mxu0 %v948
        %v993 = vpop.f32.mrf.mxu0
        %v994 = vadd.f32 0.0, %v993
        %v995 = vpop.f32.mrf.mxu0
        %v996 = vadd.f32 0.0, %v995
        %997 = vmatmul.bf16.gmra.mxu0 %v951
        %v998 = vpop.f32.mrf.mxu0
        %v999 = vadd.f32 0.0, %v998
        %v1000 = vpop.f32.mrf.mxu0
        %v1001 = vadd.f32 0.0, %v1000
        %1002 = vmatmul.bf16.gmra.mxu0 %v954
        %v1003 = vpop.f32.mrf.mxu0
        %v1004 = vadd.f32 0.0, %v1003
        %v1005 = vpop.f32.mrf.mxu0
        %v1006 = vadd.f32 0.0, %v1005
        %1007 = vdwg.mxu0
        %v1008 = vadd.f32 %v854, %v969
        %v1009 = vadd.f32 %v855, %v971
        %v1010 = vadd.f32 %v856, %v974
        %v1011 = vadd.f32 %v857, %v976
        %v1012 = vadd.f32 %v858, %v979
        %v1013 = vadd.f32 %v859, %v981
        %v1014 = vadd.f32 %v860, %v984
        %v1015 = vadd.f32 %v861, %v986
        %v1016 = vadd.f32 %v862, %v989
        %v1017 = vadd.f32 %v863, %v991
        %v1018 = vadd.f32 %v864, %v994
        %v1019 = vadd.f32 %v865, %v996
        %v1020 = vadd.f32 %v866, %v999
        %v1021 = vadd.f32 %v867, %v1001
        %v1022 = vadd.f32 %v868, %v1004
        %v1023 = vadd.f32 %v869, %v1006
        %v1024 = vld [vmem:[%s873] sm:$0xf]
        %v1025 = vld [vmem:[%s873 + $0x4] sm:$0xf]
        %v1026 = vld [vmem:[%s873 + $0x8] sm:$0x1]
        %v1027 = vld [vmem:[%s873 + $0xc] sm:$0xf]
        %v1028 = vld [vmem:[%s873 + $0x10] sm:$0xf]
        %v1029 = vld [vmem:[%s873 + $0x14] sm:$0x1]
        %v1030 = vld [vmem:[%s873 + $0x18] sm:$0xf]
        %v1031 = vld [vmem:[%s873 + $0x1c] sm:$0xf]
        %v1032 = vld [vmem:[%s873 + $0x20] sm:$0x1]
        %v1033 = vld [vmem:[%s873 + $0x24] sm:$0xf]
        %v1034 = vld [vmem:[%s873 + $0x28] sm:$0xf]
        %v1035 = vld [vmem:[%s873 + $0x2c] sm:$0x1]
        %v1036 = vld [vmem:[%s873 + $0x30] sm:$0xf]
        %v1037 = vld [vmem:[%s873 + $0x34] sm:$0xf]
        %v1038 = vld [vmem:[%s873 + $0x38] sm:$0x1]
        %v1039 = vld [vmem:[%s873 + $0x3c] sm:$0xf]
        %v1040 = vld [vmem:[%s873 + $0x40] sm:$0xf]
        %v1041 = vld [vmem:[%s873 + $0x44] sm:$0x1]
        %v1042 = vld [vmem:[%s873 + $0x48] sm:$0xf]
        %v1043 = vld [vmem:[%s873 + $0x4c] sm:$0xf]
        %v1044 = vld [vmem:[%s873 + $0x50] sm:$0x1]
        %v1045 = vld [vmem:[%s873 + $0x54] sm:$0xf]
        %v1046 = vld [vmem:[%s873 + $0x58] sm:$0xf]
        %v1047 = vld [vmem:[%s873 + $0x5c] sm:$0x1]
        %v1049 = vshrl.u32 %v1024, 16
        %v1051 = vrot.slane %v1049, 4
        %v1052 = vshll.u32 %v1024, 16
        %v1054 = vrot.slane %v1052, 5
        %v1055 = vor.u32 %v1051, %v1054
        %v1056 = vrot.slane %v1055, 4
        %v1058 = vshll.u32 %v1025, 16
        %v1060 = vrot.slane %v1058, 5
        %v1061 = vsel %vm256, %v1056, %v1060
        %v1062 = vshrl.u32 %v1025, 16
        %v1064 = vrot.slane %v1062, 4
        %v1065 = vor.u32 %v1064, %v1060
        %v1066 = vrot.slane %v1065, 4
        %v1068 = vshll.u32 %v1026, 16
        %v1070 = vrot.slane %v1068, 5
        %v1071 = vsel %vm256, %v1066, %v1070
        %v1073 = vshrl.u32 %v1027, 16
        %v1075 = vrot.slane %v1073, 4
        %v1076 = vshll.u32 %v1027, 16
        %v1078 = vrot.slane %v1076, 5
        %v1079 = vor.u32 %v1075, %v1078
        %v1080 = vrot.slane %v1079, 4
        %v1082 = vshll.u32 %v1028, 16
        %v1084 = vrot.slane %v1082, 5
        %v1085 = vsel %vm256, %v1080, %v1084
        %v1086 = vshrl.u32 %v1028, 16
        %v1088 = vrot.slane %v1086, 4
        %v1089 = vor.u32 %v1088, %v1084
        %v1090 = vrot.slane %v1089, 4
        %v1092 = vshll.u32 %v1029, 16
        %v1094 = vrot.slane %v1092, 5
        %v1095 = vsel %vm256, %v1090, %v1094
        %v1097 = vshrl.u32 %v1030, 16
        %v1099 = vrot.slane %v1097, 4
        %v1100 = vshll.u32 %v1030, 16
        %v1102 = vrot.slane %v1100, 5
        %v1103 = vor.u32 %v1099, %v1102
        %v1104 = vrot.slane %v1103, 4
        %v1106 = vshll.u32 %v1031, 16
        %v1108 = vrot.slane %v1106, 5
        %v1109 = vsel %vm256, %v1104, %v1108
        %v1110 = vshrl.u32 %v1031, 16
        %v1112 = vrot.slane %v1110, 4
        %v1113 = vor.u32 %v1112, %v1108
        %v1114 = vrot.slane %v1113, 4
        %v1116 = vshll.u32 %v1032, 16
        %v1118 = vrot.slane %v1116, 5
        %v1119 = vsel %vm256, %v1114, %v1118
        %v1121 = vshrl.u32 %v1033, 16
        %v1123 = vrot.slane %v1121, 4
        %v1124 = vshll.u32 %v1033, 16
        %v1126 = vrot.slane %v1124, 5
        %v1127 = vor.u32 %v1123, %v1126
        %v1128 = vrot.slane %v1127, 4
        %v1130 = vshll.u32 %v1034, 16
        %v1132 = vrot.slane %v1130, 5
        %v1133 = vsel %vm256, %v1128, %v1132
        %v1134 = vshrl.u32 %v1034, 16
        %v1136 = vrot.slane %v1134, 4
        %v1137 = vor.u32 %v1136, %v1132
        %v1138 = vrot.slane %v1137, 4
        %v1140 = vshll.u32 %v1035, 16
        %v1142 = vrot.slane %v1140, 5
        %v1143 = vsel %vm256, %v1138, %v1142
        %v1145 = vshrl.u32 %v1036, 16
        %v1147 = vrot.slane %v1145, 4
        %v1148 = vshll.u32 %v1036, 16
        %v1150 = vrot.slane %v1148, 5
        %v1151 = vor.u32 %v1147, %v1150
        %v1152 = vrot.slane %v1151, 4
        %v1154 = vshll.u32 %v1037, 16
        %v1156 = vrot.slane %v1154, 5
        %v1157 = vsel %vm256, %v1152, %v1156
        %v1158 = vshrl.u32 %v1037, 16
        %v1160 = vrot.slane %v1158, 4
        %v1161 = vor.u32 %v1160, %v1156
        %v1162 = vrot.slane %v1161, 4
        %v1164 = vshll.u32 %v1038, 16
        %v1166 = vrot.slane %v1164, 5
        %v1167 = vsel %vm256, %v1162, %v1166
        %v1169 = vshrl.u32 %v1039, 16
        %v1171 = vrot.slane %v1169, 4
        %v1172 = vshll.u32 %v1039, 16
        %v1174 = vrot.slane %v1172, 5
        %v1175 = vor.u32 %v1171, %v1174
        %v1176 = vrot.slane %v1175, 4
        %v1178 = vshll.u32 %v1040, 16
        %v1180 = vrot.slane %v1178, 5
        %v1181 = vsel %vm256, %v1176, %v1180
        %v1182 = vshrl.u32 %v1040, 16
        %v1184 = vrot.slane %v1182, 4
        %v1185 = vor.u32 %v1184, %v1180
        %v1186 = vrot.slane %v1185, 4
        %v1188 = vshll.u32 %v1041, 16
        %v1190 = vrot.slane %v1188, 5
        %v1191 = vsel %vm256, %v1186, %v1190
        %v1193 = vshrl.u32 %v1042, 16
        %v1195 = vrot.slane %v1193, 4
        %v1196 = vshll.u32 %v1042, 16
        %v1198 = vrot.slane %v1196, 5
        %v1199 = vor.u32 %v1195, %v1198
        %v1200 = vrot.slane %v1199, 4
        %v1202 = vshll.u32 %v1043, 16
        %v1204 = vrot.slane %v1202, 5
        %v1205 = vsel %vm256, %v1200, %v1204
        %v1206 = vshrl.u32 %v1043, 16
        %v1208 = vrot.slane %v1206, 4
        %v1209 = vor.u32 %v1208, %v1204
        %v1210 = vrot.slane %v1209, 4
        %v1212 = vshll.u32 %v1044, 16
        %v1214 = vrot.slane %v1212, 5
        %v1215 = vsel %vm256, %v1210, %v1214
        %v1217 = vshrl.u32 %v1045, 16
        %v1219 = vrot.slane %v1217, 4
        %v1220 = vshll.u32 %v1045, 16
        %v1222 = vrot.slane %v1220, 5
        %v1223 = vor.u32 %v1219, %v1222
        %v1224 = vrot.slane %v1223, 4
        %v1226 = vshll.u32 %v1046, 16
        %v1228 = vrot.slane %v1226, 5
        %v1229 = vsel %vm256, %v1224, %v1228
        %v1230 = vshrl.u32 %v1046, 16
        %v1232 = vrot.slane %v1230, 4
        %v1233 = vor.u32 %v1232, %v1228
        %v1234 = vrot.slane %v1233, 4
        %v1236 = vshll.u32 %v1047, 16
        %v1238 = vrot.slane %v1236, 5
        %v1239 = vsel %vm256, %v1234, %v1238
        %s1240 = scalar_lea.vmem %s219, 8
        %v1241 = vld [vmem:[%s1240] sm:$0x3]
        %v1242 = vunpack.c.l.b16 %v1061
        %v1243 = vunpack.c.l.b16 %v1071
        %v1244 = vunpack.c.l.b16 %v1085
        %v1245 = vunpack.c.l.b16 %v1095
        %v1246 = vunpack.c.l.b16 %v1109
        %v1247 = vunpack.c.l.b16 %v1119
        %v1248 = vunpack.c.l.b16 %v1133
        %v1249 = vunpack.c.l.b16 %v1143
        %v1250 = vunpack.c.l.b16 %v1157
        %v1251 = vunpack.c.l.b16 %v1167
        %v1252 = vunpack.c.l.b16 %v1181
        %v1253 = vunpack.c.l.b16 %v1191
        %v1254 = vunpack.c.l.b16 %v1205
        %v1255 = vunpack.c.l.b16 %v1215
        %v1256 = vunpack.c.l.b16 %v1229
        %v1257 = vunpack.c.l.b16 %v1239
        %v1258 = vpack.c.b16 %v1243, %v1242
        %v1259 = vpack.c.b16 %v1245, %v1244
        %v1260 = vpack.c.b16 %v1247, %v1246
        %v1261 = vpack.c.b16 %v1249, %v1248
        %v1262 = vpack.c.b16 %v1251, %v1250
        %v1263 = vpack.c.b16 %v1253, %v1252
        %v1264 = vpack.c.b16 %v1255, %v1254
        %v1265 = vpack.c.b16 %v1257, %v1256
        %v1267 = vsel %vm475, %v1258, 0
        %v1270 = vsel %vm475, %v1259, 0
        %v1273 = vsel %vm475, %v1260, 0
        %v1276 = vsel %vm475, %v1261, 0
        %v1279 = vsel %vm475, %v1262, 0
        %v1282 = vsel %vm475, %v1263, 0
        %v1285 = vsel %vm475, %v1264, 0
        %v1288 = vsel %vm475, %v1265, 0
        %v1291 = vsel %vm500, %v1241, 0
        %1293 = vmatpush.bf16.msra.mxu0 0
        %1294 = vmatpush.bf16.msra.mxu0 0
        %1295 = vmatpush.bf16.msra.mxu0 0
        %1296 = vmatpush.bf16.msra.mxu0 0
        %1297 = vmatpush.bf16.msra.mxu0 0
        %1298 = vmatpush.bf16.msra.mxu0 0
        %1299 = vmatpush.bf16.msra.mxu0 0
        %1300 = vmatpush.bf16.msra.mxu0 %v1291
        %1301 = vmatmul.bf16.gmra.mxu0 %v1267
        %v1302 = vpop.f32.mrf.mxu0
        %v1303 = vadd.f32 0.0, %v1302
        %v1304 = vpop.f32.mrf.mxu0
        %v1305 = vadd.f32 0.0, %v1304
        %1306 = vmatmul.bf16.gmra.mxu0 %v1270
        %v1307 = vpop.f32.mrf.mxu0
        %v1308 = vadd.f32 0.0, %v1307
        %v1309 = vpop.f32.mrf.mxu0
        %v1310 = vadd.f32 0.0, %v1309
        %1311 = vmatmul.bf16.gmra.mxu0 %v1273
        %v1312 = vpop.f32.mrf.mxu0
        %v1313 = vadd.f32 0.0, %v1312
        %v1314 = vpop.f32.mrf.mxu0
        %v1315 = vadd.f32 0.0, %v1314
        %1316 = vmatmul.bf16.gmra.mxu0 %v1276
        %v1317 = vpop.f32.mrf.mxu0
        %v1318 = vadd.f32 0.0, %v1317
        %v1319 = vpop.f32.mrf.mxu0
        %v1320 = vadd.f32 0.0, %v1319
        %1321 = vmatmul.bf16.gmra.mxu0 %v1279
        %v1322 = vpop.f32.mrf.mxu0
        %v1323 = vadd.f32 0.0, %v1322
        %v1324 = vpop.f32.mrf.mxu0
        %v1325 = vadd.f32 0.0, %v1324
        %1326 = vmatmul.bf16.gmra.mxu0 %v1282
        %v1327 = vpop.f32.mrf.mxu0
        %v1328 = vadd.f32 0.0, %v1327
        %v1329 = vpop.f32.mrf.mxu0
        %v1330 = vadd.f32 0.0, %v1329
        %1331 = vmatmul.bf16.gmra.mxu0 %v1285
        %v1332 = vpop.f32.mrf.mxu0
        %v1333 = vadd.f32 0.0, %v1332
        %v1334 = vpop.f32.mrf.mxu0
        %v1335 = vadd.f32 0.0, %v1334
        %1336 = vmatmul.bf16.gmra.mxu0 %v1288
        %v1337 = vpop.f32.mrf.mxu0
        %v1338 = vadd.f32 0.0, %v1337
        %v1339 = vpop.f32.mrf.mxu0
        %v1340 = vadd.f32 0.0, %v1339
        %1341 = vdwg.mxu0
        %v1342 = vadd.f32 %v1008, %v1303
        %v1343 = vadd.f32 %v1009, %v1305
        %v1344 = vadd.f32 %v1010, %v1308
        %v1345 = vadd.f32 %v1011, %v1310
        %v1346 = vadd.f32 %v1012, %v1313
        %v1347 = vadd.f32 %v1013, %v1315
        %v1348 = vadd.f32 %v1014, %v1318
        %v1349 = vadd.f32 %v1015, %v1320
        %v1350 = vadd.f32 %v1016, %v1323
        %v1351 = vadd.f32 %v1017, %v1325
        %v1352 = vadd.f32 %v1018, %v1328
        %v1353 = vadd.f32 %v1019, %v1330
        %v1354 = vadd.f32 %v1020, %v1333
        %v1355 = vadd.f32 %v1021, %v1335
        %v1356 = vadd.f32 %v1022, %v1338
        %v1357 = vadd.f32 %v1023, %v1340
        %v1358 = vld [vmem:[%s873] sm:$0xe]
        %v1359 = vld [vmem:[%s873 + $0xc] sm:$0xe]
        %v1360 = vld [vmem:[%s873 + $0x18] sm:$0xe]
        %v1361 = vld [vmem:[%s873 + $0x24] sm:$0xe]
        %v1362 = vld [vmem:[%s873 + $0x30] sm:$0xe]
        %v1363 = vld [vmem:[%s873 + $0x3c] sm:$0xe]
        %v1364 = vld [vmem:[%s873 + $0x48] sm:$0xe]
        %v1365 = vld [vmem:[%s873 + $0x54] sm:$0xe]
        %v1390 = vrot.slane %v1358, 5
        %v1391 = vrot.slane %v1390, 4
        %v1392 = vrot.slane %v1025, 5
        %v1393 = vsel %vm695, %v1391, %v1392
        %v1394 = vrot.slane %v1392, 4
        %v1395 = vrot.slane %v1026, 5
        %v1396 = vsel %vm695, %v1394, %v1395
        %v1397 = vrot.slane %v1359, 5
        %v1398 = vrot.slane %v1397, 4
        %v1399 = vrot.slane %v1028, 5
        %v1400 = vsel %vm695, %v1398, %v1399
        %v1401 = vrot.slane %v1399, 4
        %v1402 = vrot.slane %v1029, 5
        %v1403 = vsel %vm695, %v1401, %v1402
        %v1404 = vrot.slane %v1360, 5
        %v1405 = vrot.slane %v1404, 4
        %v1406 = vrot.slane %v1031, 5
        %v1407 = vsel %vm695, %v1405, %v1406
        %v1408 = vrot.slane %v1406, 4
        %v1409 = vrot.slane %v1032, 5
        %v1410 = vsel %vm695, %v1408, %v1409
        %v1411 = vrot.slane %v1361, 5
        %v1412 = vrot.slane %v1411, 4
        %v1413 = vrot.slane %v1034, 5
        %v1414 = vsel %vm695, %v1412, %v1413
        %v1415 = vrot.slane %v1413, 4
        %v1416 = vrot.slane %v1035, 5
        %v1417 = vsel %vm695, %v1415, %v1416
        %v1418 = vrot.slane %v1362, 5
        %v1419 = vrot.slane %v1418, 4
        %v1420 = vrot.slane %v1037, 5
        %v1421 = vsel %vm695, %v1419, %v1420
        %v1422 = vrot.slane %v1420, 4
        %v1423 = vrot.slane %v1038, 5
        %v1424 = vsel %vm695, %v1422, %v1423
        %v1425 = vrot.slane %v1363, 5
        %v1426 = vrot.slane %v1425, 4
        %v1427 = vrot.slane %v1040, 5
        %v1428 = vsel %vm695, %v1426, %v1427
        %v1429 = vrot.slane %v1427, 4
        %v1430 = vrot.slane %v1041, 5
        %v1431 = vsel %vm695, %v1429, %v1430
        %v1432 = vrot.slane %v1364, 5
        %v1433 = vrot.slane %v1432, 4
        %v1434 = vrot.slane %v1043, 5
        %v1435 = vsel %vm695, %v1433, %v1434
        %v1436 = vrot.slane %v1434, 4
        %v1437 = vrot.slane %v1044, 5
        %v1438 = vsel %vm695, %v1436, %v1437
        %v1439 = vrot.slane %v1365, 5
        %v1440 = vrot.slane %v1439, 4
        %v1441 = vrot.slane %v1046, 5
        %v1442 = vsel %vm695, %v1440, %v1441
        %v1443 = vrot.slane %v1441, 4
        %v1444 = vrot.slane %v1047, 5
        %v1445 = vsel %vm695, %v1443, %v1444
        %s1446 = scalar_lea.vmem %s219, 10
        %v1447 = vld [vmem:[%s1446] sm:$0x3]
        %v1448 = vunpack.c.l.b16 %v1393
        %v1449 = vunpack.c.l.b16 %v1396
        %v1450 = vunpack.c.l.b16 %v1400
        %v1451 = vunpack.c.l.b16 %v1403
        %v1452 = vunpack.c.l.b16 %v1407
        %v1453 = vunpack.c.l.b16 %v1410
        %v1454 = vunpack.c.l.b16 %v1414
        %v1455 = vunpack.c.l.b16 %v1417
        %v1456 = vunpack.c.l.b16 %v1421
        %v1457 = vunpack.c.l.b16 %v1424
        %v1458 = vunpack.c.l.b16 %v1428
        %v1459 = vunpack.c.l.b16 %v1431
        %v1460 = vunpack.c.l.b16 %v1435
        %v1461 = vunpack.c.l.b16 %v1438
        %v1462 = vunpack.c.l.b16 %v1442
        %v1463 = vunpack.c.l.b16 %v1445
        %v1464 = vpack.c.b16 %v1449, %v1448
        %v1465 = vpack.c.b16 %v1451, %v1450
        %v1466 = vpack.c.b16 %v1453, %v1452
        %v1467 = vpack.c.b16 %v1455, %v1454
        %v1468 = vpack.c.b16 %v1457, %v1456
        %v1469 = vpack.c.b16 %v1459, %v1458
        %v1470 = vpack.c.b16 %v1461, %v1460
        %v1471 = vpack.c.b16 %v1463, %v1462
        %v1473 = vsel %vm475, %v1464, 0
        %v1476 = vsel %vm475, %v1465, 0
        %v1479 = vsel %vm475, %v1466, 0
        %v1482 = vsel %vm475, %v1467, 0
        %v1485 = vsel %vm475, %v1468, 0
        %v1488 = vsel %vm475, %v1469, 0
        %v1491 = vsel %vm475, %v1470, 0
        %v1494 = vsel %vm475, %v1471, 0
        %v1497 = vsel %vm500, %v1447, 0
        %1499 = vmatpush.bf16.msra.mxu0 0
        %1500 = vmatpush.bf16.msra.mxu0 0
        %1501 = vmatpush.bf16.msra.mxu0 0
        %1502 = vmatpush.bf16.msra.mxu0 0
        %1503 = vmatpush.bf16.msra.mxu0 0
        %1504 = vmatpush.bf16.msra.mxu0 0
        %1505 = vmatpush.bf16.msra.mxu0 0
        %1506 = vmatpush.bf16.msra.mxu0 %v1497
        %1507 = vmatmul.bf16.gmra.mxu0 %v1473
        %v1508 = vpop.f32.mrf.mxu0
        %v1509 = vadd.f32 0.0, %v1508
        %v1510 = vpop.f32.mrf.mxu0
        %v1511 = vadd.f32 0.0, %v1510
        %1512 = vmatmul.bf16.gmra.mxu0 %v1476
        %v1513 = vpop.f32.mrf.mxu0
        %v1514 = vadd.f32 0.0, %v1513
        %v1515 = vpop.f32.mrf.mxu0
        %v1516 = vadd.f32 0.0, %v1515
        %1517 = vmatmul.bf16.gmra.mxu0 %v1479
        %v1518 = vpop.f32.mrf.mxu0
        %v1519 = vadd.f32 0.0, %v1518
        %v1520 = vpop.f32.mrf.mxu0
        %v1521 = vadd.f32 0.0, %v1520
        %1522 = vmatmul.bf16.gmra.mxu0 %v1482
        %v1523 = vpop.f32.mrf.mxu0
        %v1524 = vadd.f32 0.0, %v1523
        %v1525 = vpop.f32.mrf.mxu0
        %v1526 = vadd.f32 0.0, %v1525
        %1527 = vmatmul.bf16.gmra.mxu0 %v1485
        %v1528 = vpop.f32.mrf.mxu0
        %v1529 = vadd.f32 0.0, %v1528
        %v1530 = vpop.f32.mrf.mxu0
        %v1531 = vadd.f32 0.0, %v1530
        %1532 = vmatmul.bf16.gmra.mxu0 %v1488
        %v1533 = vpop.f32.mrf.mxu0
        %v1534 = vadd.f32 0.0, %v1533
        %v1535 = vpop.f32.mrf.mxu0
        %v1536 = vadd.f32 0.0, %v1535
        %1537 = vmatmul.bf16.gmra.mxu0 %v1491
        %v1538 = vpop.f32.mrf.mxu0
        %v1539 = vadd.f32 0.0, %v1538
        %v1540 = vpop.f32.mrf.mxu0
        %v1541 = vadd.f32 0.0, %v1540
        %1542 = vmatmul.bf16.gmra.mxu0 %v1494
        %v1543 = vpop.f32.mrf.mxu0
        %v1544 = vadd.f32 0.0, %v1543
        %v1545 = vpop.f32.mrf.mxu0
        %v1546 = vadd.f32 0.0, %v1545
        %1547 = vdwg.mxu0
        %v1548 = vadd.f32 %v1342, %v1509
        %v1549 = vadd.f32 %v1343, %v1511
        %v1550 = vadd.f32 %v1344, %v1514
        %v1551 = vadd.f32 %v1345, %v1516
        %v1552 = vadd.f32 %v1346, %v1519
        %v1553 = vadd.f32 %v1347, %v1521
        %v1554 = vadd.f32 %v1348, %v1524
        %v1555 = vadd.f32 %v1349, %v1526
        %v1556 = vadd.f32 %v1350, %v1529
        %v1557 = vadd.f32 %v1351, %v1531
        %v1558 = vadd.f32 %v1352, %v1534
        %v1559 = vadd.f32 %v1353, %v1536
        %v1560 = vadd.f32 %v1354, %v1539
        %v1561 = vadd.f32 %v1355, %v1541
        %v1562 = vadd.f32 %v1356, %v1544
        %v1563 = vadd.f32 %v1357, %v1546
        %s1564 = sadd.s32 %s225, 2
        %s1565 = smul.u32 %s1564, 3
        %s1566 = smul.addr %s1565, 4
        %s1567 = scalar_lea.vmem %s215, %s1566
        %v1568 = vld [vmem:[%s1567] sm:$0xf]
        %v1569 = vld [vmem:[%s1567 + $0x4] sm:$0xf]
        %v1570 = vld [vmem:[%s1567 + $0xc] sm:$0xf]
        %v1571 = vld [vmem:[%s1567 + $0x10] sm:$0xf]
        %v1572 = vld [vmem:[%s1567 + $0x18] sm:$0xf]
        %v1573 = vld [vmem:[%s1567 + $0x1c] sm:$0xf]
        %v1574 = vld [vmem:[%s1567 + $0x24] sm:$0xf]
        %v1575 = vld [vmem:[%s1567 + $0x28] sm:$0xf]
        %v1576 = vld [vmem:[%s1567 + $0x30] sm:$0xf]
        %v1577 = vld [vmem:[%s1567 + $0x34] sm:$0xf]
        %v1578 = vld [vmem:[%s1567 + $0x3c] sm:$0xf]
        %v1579 = vld [vmem:[%s1567 + $0x40] sm:$0xf]
        %v1580 = vld [vmem:[%s1567 + $0x48] sm:$0xf]
        %v1581 = vld [vmem:[%s1567 + $0x4c] sm:$0xf]
        %v1582 = vld [vmem:[%s1567 + $0x54] sm:$0xf]
        %v1583 = vld [vmem:[%s1567 + $0x58] sm:$0xf]
        %s1584 = scalar_lea.vmem %s219, 12
        %v1585 = vld [vmem:[%s1584] sm:$0x3]
        %v1602 = vunpack.c.l.b16 %v1568
        %v1603 = vunpack.c.l.b16 %v1569
        %v1604 = vunpack.c.l.b16 %v1570
        %v1605 = vunpack.c.l.b16 %v1571
        %v1606 = vunpack.c.l.b16 %v1572
        %v1607 = vunpack.c.l.b16 %v1573
        %v1608 = vunpack.c.l.b16 %v1574
        %v1609 = vunpack.c.l.b16 %v1575
        %v1610 = vunpack.c.l.b16 %v1576
        %v1611 = vunpack.c.l.b16 %v1577
        %v1612 = vunpack.c.l.b16 %v1578
        %v1613 = vunpack.c.l.b16 %v1579
        %v1614 = vunpack.c.l.b16 %v1580
        %v1615 = vunpack.c.l.b16 %v1581
        %v1616 = vunpack.c.l.b16 %v1582
        %v1617 = vunpack.c.l.b16 %v1583
        %v1618 = vpack.c.b16 %v1603, %v1602
        %v1619 = vpack.c.b16 %v1605, %v1604
        %v1620 = vpack.c.b16 %v1607, %v1606
        %v1621 = vpack.c.b16 %v1609, %v1608
        %v1622 = vpack.c.b16 %v1611, %v1610
        %v1623 = vpack.c.b16 %v1613, %v1612
        %v1624 = vpack.c.b16 %v1615, %v1614
        %v1625 = vpack.c.b16 %v1617, %v1616
        %v1627 = vsel %vm475, %v1618, 0
        %v1630 = vsel %vm475, %v1619, 0
        %v1633 = vsel %vm475, %v1620, 0
        %v1636 = vsel %vm475, %v1621, 0
        %v1639 = vsel %vm475, %v1622, 0
        %v1642 = vsel %vm475, %v1623, 0
        %v1645 = vsel %vm475, %v1624, 0
        %v1648 = vsel %vm475, %v1625, 0
        %v1651 = vsel %vm500, %v1585, 0
        %1653 = vmatpush.bf16.msra.mxu0 0
        %1654 = vmatpush.bf16.msra.mxu0 0
        %1655 = vmatpush.bf16.msra.mxu0 0
        %1656 = vmatpush.bf16.msra.mxu0 0
        %1657 = vmatpush.bf16.msra.mxu0 0
        %1658 = vmatpush.bf16.msra.mxu0 0
        %1659 = vmatpush.bf16.msra.mxu0 0
        %1660 = vmatpush.bf16.msra.mxu0 %v1651
        %1661 = vmatmul.bf16.gmra.mxu0 %v1627
        %v1662 = vpop.f32.mrf.mxu0
        %v1663 = vadd.f32 0.0, %v1662
        %v1664 = vpop.f32.mrf.mxu0
        %v1665 = vadd.f32 0.0, %v1664
        %1666 = vmatmul.bf16.gmra.mxu0 %v1630
        %v1667 = vpop.f32.mrf.mxu0
        %v1668 = vadd.f32 0.0, %v1667
        %v1669 = vpop.f32.mrf.mxu0
        %v1670 = vadd.f32 0.0, %v1669
        %1671 = vmatmul.bf16.gmra.mxu0 %v1633
        %v1672 = vpop.f32.mrf.mxu0
        %v1673 = vadd.f32 0.0, %v1672
        %v1674 = vpop.f32.mrf.mxu0
        %v1675 = vadd.f32 0.0, %v1674
        %1676 = vmatmul.bf16.gmra.mxu0 %v1636
        %v1677 = vpop.f32.mrf.mxu0
        %v1678 = vadd.f32 0.0, %v1677
        %v1679 = vpop.f32.mrf.mxu0
        %v1680 = vadd.f32 0.0, %v1679
        %1681 = vmatmul.bf16.gmra.mxu0 %v1639
        %v1682 = vpop.f32.mrf.mxu0
        %v1683 = vadd.f32 0.0, %v1682
        %v1684 = vpop.f32.mrf.mxu0
        %v1685 = vadd.f32 0.0, %v1684
        %1686 = vmatmul.bf16.gmra.mxu0 %v1642
        %v1687 = vpop.f32.mrf.mxu0
        %v1688 = vadd.f32 0.0, %v1687
        %v1689 = vpop.f32.mrf.mxu0
        %v1690 = vadd.f32 0.0, %v1689
        %1691 = vmatmul.bf16.gmra.mxu0 %v1645
        %v1692 = vpop.f32.mrf.mxu0
        %v1693 = vadd.f32 0.0, %v1692
        %v1694 = vpop.f32.mrf.mxu0
        %v1695 = vadd.f32 0.0, %v1694
        %1696 = vmatmul.bf16.gmra.mxu0 %v1648
        %v1697 = vpop.f32.mrf.mxu0
        %v1698 = vadd.f32 0.0, %v1697
        %v1699 = vpop.f32.mrf.mxu0
        %v1700 = vadd.f32 0.0, %v1699
        %1701 = vdwg.mxu0
        %v1702 = vadd.f32 %v1548, %v1663
        %v1703 = vadd.f32 %v1549, %v1665
        %v1704 = vadd.f32 %v1550, %v1668
        %v1705 = vadd.f32 %v1551, %v1670
        %v1706 = vadd.f32 %v1552, %v1673
        %v1707 = vadd.f32 %v1553, %v1675
        %v1708 = vadd.f32 %v1554, %v1678
        %v1709 = vadd.f32 %v1555, %v1680
        %v1710 = vadd.f32 %v1556, %v1683
        %v1711 = vadd.f32 %v1557, %v1685
        %v1712 = vadd.f32 %v1558, %v1688
        %v1713 = vadd.f32 %v1559, %v1690
        %v1714 = vadd.f32 %v1560, %v1693
        %v1715 = vadd.f32 %v1561, %v1695
        %v1716 = vadd.f32 %v1562, %v1698
        %v1717 = vadd.f32 %v1563, %v1700
        %v1718 = vld [vmem:[%s1567] sm:$0xf]
        %v1719 = vld [vmem:[%s1567 + $0x4] sm:$0xf]
        %v1720 = vld [vmem:[%s1567 + $0x8] sm:$0x1]
        %v1721 = vld [vmem:[%s1567 + $0xc] sm:$0xf]
        %v1722 = vld [vmem:[%s1567 + $0x10] sm:$0xf]
        %v1723 = vld [vmem:[%s1567 + $0x14] sm:$0x1]
        %v1724 = vld [vmem:[%s1567 + $0x18] sm:$0xf]
        %v1725 = vld [vmem:[%s1567 + $0x1c] sm:$0xf]
        %v1726 = vld [vmem:[%s1567 + $0x20] sm:$0x1]
        %v1727 = vld [vmem:[%s1567 + $0x24] sm:$0xf]
        %v1728 = vld [vmem:[%s1567 + $0x28] sm:$0xf]
        %v1729 = vld [vmem:[%s1567 + $0x2c] sm:$0x1]
        %v1730 = vld [vmem:[%s1567 + $0x30] sm:$0xf]
        %v1731 = vld [vmem:[%s1567 + $0x34] sm:$0xf]
        %v1732 = vld [vmem:[%s1567 + $0x38] sm:$0x1]
        %v1733 = vld [vmem:[%s1567 + $0x3c] sm:$0xf]
        %v1734 = vld [vmem:[%s1567 + $0x40] sm:$0xf]
        %v1735 = vld [vmem:[%s1567 + $0x44] sm:$0x1]
        %v1736 = vld [vmem:[%s1567 + $0x48] sm:$0xf]
        %v1737 = vld [vmem:[%s1567 + $0x4c] sm:$0xf]
        %v1738 = vld [vmem:[%s1567 + $0x50] sm:$0x1]
        %v1739 = vld [vmem:[%s1567 + $0x54] sm:$0xf]
        %v1740 = vld [vmem:[%s1567 + $0x58] sm:$0xf]
        %v1741 = vld [vmem:[%s1567 + $0x5c] sm:$0x1]
        %v1743 = vshrl.u32 %v1718, 16
        %v1745 = vrot.slane %v1743, 4
        %v1746 = vshll.u32 %v1718, 16
        %v1748 = vrot.slane %v1746, 5
        %v1749 = vor.u32 %v1745, %v1748
        %v1750 = vrot.slane %v1749, 4
        %v1752 = vshll.u32 %v1719, 16
        %v1754 = vrot.slane %v1752, 5
        %v1755 = vsel %vm256, %v1750, %v1754
        %v1756 = vshrl.u32 %v1719, 16
        %v1758 = vrot.slane %v1756, 4
        %v1759 = vor.u32 %v1758, %v1754
        %v1760 = vrot.slane %v1759, 4
        %v1762 = vshll.u32 %v1720, 16
        %v1764 = vrot.slane %v1762, 5
        %v1765 = vsel %vm256, %v1760, %v1764
        %v1767 = vshrl.u32 %v1721, 16
        %v1769 = vrot.slane %v1767, 4
        %v1770 = vshll.u32 %v1721, 16
        %v1772 = vrot.slane %v1770, 5
        %v1773 = vor.u32 %v1769, %v1772
        %v1774 = vrot.slane %v1773, 4
        %v1776 = vshll.u32 %v1722, 16
        %v1778 = vrot.slane %v1776, 5
        %v1779 = vsel %vm256, %v1774, %v1778
        %v1780 = vshrl.u32 %v1722, 16
        %v1782 = vrot.slane %v1780, 4
        %v1783 = vor.u32 %v1782, %v1778
        %v1784 = vrot.slane %v1783, 4
        %v1786 = vshll.u32 %v1723, 16
        %v1788 = vrot.slane %v1786, 5
        %v1789 = vsel %vm256, %v1784, %v1788
        %v1791 = vshrl.u32 %v1724, 16
        %v1793 = vrot.slane %v1791, 4
        %v1794 = vshll.u32 %v1724, 16
        %v1796 = vrot.slane %v1794, 5
        %v1797 = vor.u32 %v1793, %v1796
        %v1798 = vrot.slane %v1797, 4
        %v1800 = vshll.u32 %v1725, 16
        %v1802 = vrot.slane %v1800, 5
        %v1803 = vsel %vm256, %v1798, %v1802
        %v1804 = vshrl.u32 %v1725, 16
        %v1806 = vrot.slane %v1804, 4
        %v1807 = vor.u32 %v1806, %v1802
        %v1808 = vrot.slane %v1807, 4
        %v1810 = vshll.u32 %v1726, 16
        %v1812 = vrot.slane %v1810, 5
        %v1813 = vsel %vm256, %v1808, %v1812
        %v1815 = vshrl.u32 %v1727, 16
        %v1817 = vrot.slane %v1815, 4
        %v1818 = vshll.u32 %v1727, 16
        %v1820 = vrot.slane %v1818, 5
        %v1821 = vor.u32 %v1817, %v1820
        %v1822 = vrot.slane %v1821, 4
        %v1824 = vshll.u32 %v1728, 16
        %v1826 = vrot.slane %v1824, 5
        %v1827 = vsel %vm256, %v1822, %v1826
        %v1828 = vshrl.u32 %v1728, 16
        %v1830 = vrot.slane %v1828, 4
        %v1831 = vor.u32 %v1830, %v1826
        %v1832 = vrot.slane %v1831, 4
        %v1834 = vshll.u32 %v1729, 16
        %v1836 = vrot.slane %v1834, 5
        %v1837 = vsel %vm256, %v1832, %v1836
        %v1839 = vshrl.u32 %v1730, 16
        %v1841 = vrot.slane %v1839, 4
        %v1842 = vshll.u32 %v1730, 16
        %v1844 = vrot.slane %v1842, 5
        %v1845 = vor.u32 %v1841, %v1844
        %v1846 = vrot.slane %v1845, 4
        %v1848 = vshll.u32 %v1731, 16
        %v1850 = vrot.slane %v1848, 5
        %v1851 = vsel %vm256, %v1846, %v1850
        %v1852 = vshrl.u32 %v1731, 16
        %v1854 = vrot.slane %v1852, 4
        %v1855 = vor.u32 %v1854, %v1850
        %v1856 = vrot.slane %v1855, 4
        %v1858 = vshll.u32 %v1732, 16
        %v1860 = vrot.slane %v1858, 5
        %v1861 = vsel %vm256, %v1856, %v1860
        %v1863 = vshrl.u32 %v1733, 16
        %v1865 = vrot.slane %v1863, 4
        %v1866 = vshll.u32 %v1733, 16
        %v1868 = vrot.slane %v1866, 5
        %v1869 = vor.u32 %v1865, %v1868
        %v1870 = vrot.slane %v1869, 4
        %v1872 = vshll.u32 %v1734, 16
        %v1874 = vrot.slane %v1872, 5
        %v1875 = vsel %vm256, %v1870, %v1874
        %v1876 = vshrl.u32 %v1734, 16
        %v1878 = vrot.slane %v1876, 4
        %v1879 = vor.u32 %v1878, %v1874
        %v1880 = vrot.slane %v1879, 4
        %v1882 = vshll.u32 %v1735, 16
        %v1884 = vrot.slane %v1882, 5
        %v1885 = vsel %vm256, %v1880, %v1884
        %v1887 = vshrl.u32 %v1736, 16
        %v1889 = vrot.slane %v1887, 4
        %v1890 = vshll.u32 %v1736, 16
        %v1892 = vrot.slane %v1890, 5
        %v1893 = vor.u32 %v1889, %v1892
        %v1894 = vrot.slane %v1893, 4
        %v1896 = vshll.u32 %v1737, 16
        %v1898 = vrot.slane %v1896, 5
        %v1899 = vsel %vm256, %v1894, %v1898
        %v1900 = vshrl.u32 %v1737, 16
        %v1902 = vrot.slane %v1900, 4
        %v1903 = vor.u32 %v1902, %v1898
        %v1904 = vrot.slane %v1903, 4
        %v1906 = vshll.u32 %v1738, 16
        %v1908 = vrot.slane %v1906, 5
        %v1909 = vsel %vm256, %v1904, %v1908
        %v1911 = vshrl.u32 %v1739, 16
        %v1913 = vrot.slane %v1911, 4
        %v1914 = vshll.u32 %v1739, 16
        %v1916 = vrot.slane %v1914, 5
        %v1917 = vor.u32 %v1913, %v1916
        %v1918 = vrot.slane %v1917, 4
        %v1920 = vshll.u32 %v1740, 16
        %v1922 = vrot.slane %v1920, 5
        %v1923 = vsel %vm256, %v1918, %v1922
        %v1924 = vshrl.u32 %v1740, 16
        %v1926 = vrot.slane %v1924, 4
        %v1927 = vor.u32 %v1926, %v1922
        %v1928 = vrot.slane %v1927, 4
        %v1930 = vshll.u32 %v1741, 16
        %v1932 = vrot.slane %v1930, 5
        %v1933 = vsel %vm256, %v1928, %v1932
        %s1934 = scalar_lea.vmem %s219, 14
        %v1935 = vld [vmem:[%s1934] sm:$0x3]
        %v1936 = vunpack.c.l.b16 %v1755
        %v1937 = vunpack.c.l.b16 %v1765
        %v1938 = vunpack.c.l.b16 %v1779
        %v1939 = vunpack.c.l.b16 %v1789
        %v1940 = vunpack.c.l.b16 %v1803
        %v1941 = vunpack.c.l.b16 %v1813
        %v1942 = vunpack.c.l.b16 %v1827
        %v1943 = vunpack.c.l.b16 %v1837
        %v1944 = vunpack.c.l.b16 %v1851
        %v1945 = vunpack.c.l.b16 %v1861
        %v1946 = vunpack.c.l.b16 %v1875
        %v1947 = vunpack.c.l.b16 %v1885
        %v1948 = vunpack.c.l.b16 %v1899
        %v1949 = vunpack.c.l.b16 %v1909
        %v1950 = vunpack.c.l.b16 %v1923
        %v1951 = vunpack.c.l.b16 %v1933
        %v1952 = vpack.c.b16 %v1937, %v1936
        %v1953 = vpack.c.b16 %v1939, %v1938
        %v1954 = vpack.c.b16 %v1941, %v1940
        %v1955 = vpack.c.b16 %v1943, %v1942
        %v1956 = vpack.c.b16 %v1945, %v1944
        %v1957 = vpack.c.b16 %v1947, %v1946
        %v1958 = vpack.c.b16 %v1949, %v1948
        %v1959 = vpack.c.b16 %v1951, %v1950
        %v1961 = vsel %vm475, %v1952, 0
        %v1964 = vsel %vm475, %v1953, 0
        %v1967 = vsel %vm475, %v1954, 0
        %v1970 = vsel %vm475, %v1955, 0
        %v1973 = vsel %vm475, %v1956, 0
        %v1976 = vsel %vm475, %v1957, 0
        %v1979 = vsel %vm475, %v1958, 0
        %v1982 = vsel %vm475, %v1959, 0
        %v1985 = vsel %vm500, %v1935, 0
        %1987 = vmatpush.bf16.msra.mxu0 0
        %1988 = vmatpush.bf16.msra.mxu0 0
        %1989 = vmatpush.bf16.msra.mxu0 0
        %1990 = vmatpush.bf16.msra.mxu0 0
        %1991 = vmatpush.bf16.msra.mxu0 0
        %1992 = vmatpush.bf16.msra.mxu0 0
        %1993 = vmatpush.bf16.msra.mxu0 0
        %1994 = vmatpush.bf16.msra.mxu0 %v1985
        %1995 = vmatmul.bf16.gmra.mxu0 %v1961
        %v1996 = vpop.f32.mrf.mxu0
        %v1997 = vadd.f32 0.0, %v1996
        %v1998 = vpop.f32.mrf.mxu0
        %v1999 = vadd.f32 0.0, %v1998
        %2000 = vmatmul.bf16.gmra.mxu0 %v1964
        %v2001 = vpop.f32.mrf.mxu0
        %v2002 = vadd.f32 0.0, %v2001
        %v2003 = vpop.f32.mrf.mxu0
        %v2004 = vadd.f32 0.0, %v2003
        %2005 = vmatmul.bf16.gmra.mxu0 %v1967
        %v2006 = vpop.f32.mrf.mxu0
        %v2007 = vadd.f32 0.0, %v2006
        %v2008 = vpop.f32.mrf.mxu0
        %v2009 = vadd.f32 0.0, %v2008
        %2010 = vmatmul.bf16.gmra.mxu0 %v1970
        %v2011 = vpop.f32.mrf.mxu0
        %v2012 = vadd.f32 0.0, %v2011
        %v2013 = vpop.f32.mrf.mxu0
        %v2014 = vadd.f32 0.0, %v2013
        %2015 = vmatmul.bf16.gmra.mxu0 %v1973
        %v2016 = vpop.f32.mrf.mxu0
        %v2017 = vadd.f32 0.0, %v2016
        %v2018 = vpop.f32.mrf.mxu0
        %v2019 = vadd.f32 0.0, %v2018
        %2020 = vmatmul.bf16.gmra.mxu0 %v1976
        %v2021 = vpop.f32.mrf.mxu0
        %v2022 = vadd.f32 0.0, %v2021
        %v2023 = vpop.f32.mrf.mxu0
        %v2024 = vadd.f32 0.0, %v2023
        %2025 = vmatmul.bf16.gmra.mxu0 %v1979
        %v2026 = vpop.f32.mrf.mxu0
        %v2027 = vadd.f32 0.0, %v2026
        %v2028 = vpop.f32.mrf.mxu0
        %v2029 = vadd.f32 0.0, %v2028
        %2030 = vmatmul.bf16.gmra.mxu0 %v1982
        %v2031 = vpop.f32.mrf.mxu0
        %v2032 = vadd.f32 0.0, %v2031
        %v2033 = vpop.f32.mrf.mxu0
        %v2034 = vadd.f32 0.0, %v2033
        %2035 = vdwg.mxu0
        %v2036 = vadd.f32 %v1702, %v1997
        %v2037 = vadd.f32 %v1703, %v1999
        %v2038 = vadd.f32 %v1704, %v2002
        %v2039 = vadd.f32 %v1705, %v2004
        %v2040 = vadd.f32 %v1706, %v2007
        %v2041 = vadd.f32 %v1707, %v2009
        %v2042 = vadd.f32 %v1708, %v2012
        %v2043 = vadd.f32 %v1709, %v2014
        %v2044 = vadd.f32 %v1710, %v2017
        %v2045 = vadd.f32 %v1711, %v2019
        %v2046 = vadd.f32 %v1712, %v2022
        %v2047 = vadd.f32 %v1713, %v2024
        %v2048 = vadd.f32 %v1714, %v2027
        %v2049 = vadd.f32 %v1715, %v2029
        %v2050 = vadd.f32 %v1716, %v2032
        %v2051 = vadd.f32 %v1717, %v2034
        %v2052 = vld [vmem:[%s1567] sm:$0xe]
        %v2053 = vld [vmem:[%s1567 + $0xc] sm:$0xe]
        %v2054 = vld [vmem:[%s1567 + $0x18] sm:$0xe]
        %v2055 = vld [vmem:[%s1567 + $0x24] sm:$0xe]
        %v2056 = vld [vmem:[%s1567 + $0x30] sm:$0xe]
        %v2057 = vld [vmem:[%s1567 + $0x3c] sm:$0xe]
        %v2058 = vld [vmem:[%s1567 + $0x48] sm:$0xe]
        %v2059 = vld [vmem:[%s1567 + $0x54] sm:$0xe]
        %v2084 = vrot.slane %v2052, 5
        %v2085 = vrot.slane %v2084, 4
        %v2086 = vrot.slane %v1719, 5
        %v2087 = vsel %vm695, %v2085, %v2086
        %v2088 = vrot.slane %v2086, 4
        %v2089 = vrot.slane %v1720, 5
        %v2090 = vsel %vm695, %v2088, %v2089
        %v2091 = vrot.slane %v2053, 5
        %v2092 = vrot.slane %v2091, 4
        %v2093 = vrot.slane %v1722, 5
        %v2094 = vsel %vm695, %v2092, %v2093
        %v2095 = vrot.slane %v2093, 4
        %v2096 = vrot.slane %v1723, 5
        %v2097 = vsel %vm695, %v2095, %v2096
        %v2098 = vrot.slane %v2054, 5
        %v2099 = vrot.slane %v2098, 4
        %v2100 = vrot.slane %v1725, 5
        %v2101 = vsel %vm695, %v2099, %v2100
        %v2102 = vrot.slane %v2100, 4
        %v2103 = vrot.slane %v1726, 5
        %v2104 = vsel %vm695, %v2102, %v2103
        %v2105 = vrot.slane %v2055, 5
        %v2106 = vrot.slane %v2105, 4
        %v2107 = vrot.slane %v1728, 5
        %v2108 = vsel %vm695, %v2106, %v2107
        %v2109 = vrot.slane %v2107, 4
        %v2110 = vrot.slane %v1729, 5
        %v2111 = vsel %vm695, %v2109, %v2110
        %v2112 = vrot.slane %v2056, 5
        %v2113 = vrot.slane %v2112, 4
        %v2114 = vrot.slane %v1731, 5
        %v2115 = vsel %vm695, %v2113, %v2114
        %v2116 = vrot.slane %v2114, 4
        %v2117 = vrot.slane %v1732, 5
        %v2118 = vsel %vm695, %v2116, %v2117
        %v2119 = vrot.slane %v2057, 5
        %v2120 = vrot.slane %v2119, 4
        %v2121 = vrot.slane %v1734, 5
        %v2122 = vsel %vm695, %v2120, %v2121
        %v2123 = vrot.slane %v2121, 4
        %v2124 = vrot.slane %v1735, 5
        %v2125 = vsel %vm695, %v2123, %v2124
        %v2126 = vrot.slane %v2058, 5
        %v2127 = vrot.slane %v2126, 4
        %v2128 = vrot.slane %v1737, 5
        %v2129 = vsel %vm695, %v2127, %v2128
        %v2130 = vrot.slane %v2128, 4
        %v2131 = vrot.slane %v1738, 5
        %v2132 = vsel %vm695, %v2130, %v2131
        %v2133 = vrot.slane %v2059, 5
        %v2134 = vrot.slane %v2133, 4
        %v2135 = vrot.slane %v1740, 5
        %v2136 = vsel %vm695, %v2134, %v2135
        %v2137 = vrot.slane %v2135, 4
        %v2138 = vrot.slane %v1741, 5
        %v2139 = vsel %vm695, %v2137, %v2138
        %s2140 = scalar_lea.vmem %s219, 16
        %v2141 = vld [vmem:[%s2140] sm:$0x3]
        %v2142 = vunpack.c.l.b16 %v2087
        %v2143 = vunpack.c.l.b16 %v2090
        %v2144 = vunpack.c.l.b16 %v2094
        %v2145 = vunpack.c.l.b16 %v2097
        %v2146 = vunpack.c.l.b16 %v2101
        %v2147 = vunpack.c.l.b16 %v2104
        %v2148 = vunpack.c.l.b16 %v2108
        %v2149 = vunpack.c.l.b16 %v2111
        %v2150 = vunpack.c.l.b16 %v2115
        %v2151 = vunpack.c.l.b16 %v2118
        %v2152 = vunpack.c.l.b16 %v2122
        %v2153 = vunpack.c.l.b16 %v2125
        %v2154 = vunpack.c.l.b16 %v2129
        %v2155 = vunpack.c.l.b16 %v2132
        %v2156 = vunpack.c.l.b16 %v2136
        %v2157 = vunpack.c.l.b16 %v2139
        %v2158 = vpack.c.b16 %v2143, %v2142
        %v2159 = vpack.c.b16 %v2145, %v2144
        %v2160 = vpack.c.b16 %v2147, %v2146
        %v2161 = vpack.c.b16 %v2149, %v2148
        %v2162 = vpack.c.b16 %v2151, %v2150
        %v2163 = vpack.c.b16 %v2153, %v2152
        %v2164 = vpack.c.b16 %v2155, %v2154
        %v2165 = vpack.c.b16 %v2157, %v2156
        %v2167 = vsel %vm475, %v2158, 0
        %v2170 = vsel %vm475, %v2159, 0
        %v2173 = vsel %vm475, %v2160, 0
        %v2176 = vsel %vm475, %v2161, 0
        %v2179 = vsel %vm475, %v2162, 0
        %v2182 = vsel %vm475, %v2163, 0
        %v2185 = vsel %vm475, %v2164, 0
        %v2188 = vsel %vm475, %v2165, 0
        %v2191 = vsel %vm500, %v2141, 0
        %2193 = vmatpush.bf16.msra.mxu0 0
        %2194 = vmatpush.bf16.msra.mxu0 0
        %2195 = vmatpush.bf16.msra.mxu0 0
        %2196 = vmatpush.bf16.msra.mxu0 0
        %2197 = vmatpush.bf16.msra.mxu0 0
        %2198 = vmatpush.bf16.msra.mxu0 0
        %2199 = vmatpush.bf16.msra.mxu0 0
        %2200 = vmatpush.bf16.msra.mxu0 %v2191
        %2201 = vmatmul.bf16.gmra.mxu0 %v2167
        %v2202 = vpop.f32.mrf.mxu0
        %v2203 = vadd.f32 0.0, %v2202
        %v2204 = vpop.f32.mrf.mxu0
        %v2205 = vadd.f32 0.0, %v2204
        %2206 = vmatmul.bf16.gmra.mxu0 %v2170
        %v2207 = vpop.f32.mrf.mxu0
        %v2208 = vadd.f32 0.0, %v2207
        %v2209 = vpop.f32.mrf.mxu0
        %v2210 = vadd.f32 0.0, %v2209
        %2211 = vmatmul.bf16.gmra.mxu0 %v2173
        %v2212 = vpop.f32.mrf.mxu0
        %v2213 = vadd.f32 0.0, %v2212
        %v2214 = vpop.f32.mrf.mxu0
        %v2215 = vadd.f32 0.0, %v2214
        %2216 = vmatmul.bf16.gmra.mxu0 %v2176
        %v2217 = vpop.f32.mrf.mxu0
        %v2218 = vadd.f32 0.0, %v2217
        %v2219 = vpop.f32.mrf.mxu0
        %v2220 = vadd.f32 0.0, %v2219
        %2221 = vmatmul.bf16.gmra.mxu0 %v2179
        %v2222 = vpop.f32.mrf.mxu0
        %v2223 = vadd.f32 0.0, %v2222
        %v2224 = vpop.f32.mrf.mxu0
        %v2225 = vadd.f32 0.0, %v2224
        %2226 = vmatmul.bf16.gmra.mxu0 %v2182
        %v2227 = vpop.f32.mrf.mxu0
        %v2228 = vadd.f32 0.0, %v2227
        %v2229 = vpop.f32.mrf.mxu0
        %v2230 = vadd.f32 0.0, %v2229
        %2231 = vmatmul.bf16.gmra.mxu0 %v2185
        %v2232 = vpop.f32.mrf.mxu0
        %v2233 = vadd.f32 0.0, %v2232
        %v2234 = vpop.f32.mrf.mxu0
        %v2235 = vadd.f32 0.0, %v2234
        %2236 = vmatmul.bf16.gmra.mxu0 %v2188
        %v2237 = vpop.f32.mrf.mxu0
        %v2238 = vadd.f32 0.0, %v2237
        %v2239 = vpop.f32.mrf.mxu0
        %v2240 = vadd.f32 0.0, %v2239
        %2241 = vdwg.mxu0
        %v2242 = vadd.f32 %v2036, %v2203
        %v2243 = vadd.f32 %v2037, %v2205
        %v2244 = vadd.f32 %v2038, %v2208
        %v2245 = vadd.f32 %v2039, %v2210
        %v2246 = vadd.f32 %v2040, %v2213
        %v2247 = vadd.f32 %v2041, %v2215
        %v2248 = vadd.f32 %v2042, %v2218
        %v2249 = vadd.f32 %v2043, %v2220
        %v2250 = vadd.f32 %v2044, %v2223
        %v2251 = vadd.f32 %v2045, %v2225
        %v2252 = vadd.f32 %v2046, %v2228
        %v2253 = vadd.f32 %v2047, %v2230
        %v2254 = vadd.f32 %v2048, %v2233
        %v2255 = vadd.f32 %v2049, %v2235
        %v2256 = vadd.f32 %v2050, %v2238
        %v2257 = vadd.f32 %v2051, %v2240
        %v2258 = vld [vmem:[%s222] sm:$0x1]
        %v2260 = vperm.slane %v2258, 0
        %v2262 = vadd.f32 %v2242, %v2260
        %v2263 = vadd.f32 %v2243, %v2260
        %v2264 = vadd.f32 %v2244, %v2260
        %v2265 = vadd.f32 %v2245, %v2260
        %v2266 = vadd.f32 %v2246, %v2260
        %v2267 = vadd.f32 %v2247, %v2260
        %v2268 = vadd.f32 %v2248, %v2260
        %v2269 = vadd.f32 %v2249, %v2260
        %v2270 = vadd.f32 %v2250, %v2260
        %v2271 = vadd.f32 %v2251, %v2260
        %v2272 = vadd.f32 %v2252, %v2260
        %v2273 = vadd.f32 %v2253, %v2260
        %v2274 = vadd.f32 %v2254, %v2260
        %v2275 = vadd.f32 %v2255, %v2260
        %v2276 = vadd.f32 %v2256, %v2260
        %v2277 = vadd.f32 %v2257, %v2260
        %v2278 = vmax.f32 %v2262, 0.0
        %v2279 = vmax.f32 %v2263, 0.0
        %v2280 = vmax.f32 %v2264, 0.0
        %v2281 = vmax.f32 %v2265, 0.0
        %v2282 = vmax.f32 %v2266, 0.0
        %v2283 = vmax.f32 %v2267, 0.0
        %v2284 = vmax.f32 %v2268, 0.0
        %v2285 = vmax.f32 %v2269, 0.0
        %v2286 = vmax.f32 %v2270, 0.0
        %v2287 = vmax.f32 %v2271, 0.0
        %v2288 = vmax.f32 %v2272, 0.0
        %v2289 = vmax.f32 %v2273, 0.0
        %v2290 = vmax.f32 %v2274, 0.0
        %v2291 = vmax.f32 %v2275, 0.0
        %v2292 = vmax.f32 %v2276, 0.0
        %v2293 = vmax.f32 %v2277, 0.0
        %2294 = vst [vmem:[%s210] sm:$0xff] %v2278
        %2295 = vst [vmem:[%s210 + $0x8] sm:$0xff] %v2279
        %2296 = vst [vmem:[%s210 + $0x10] sm:$0xff] %v2280
        %2297 = vst [vmem:[%s210 + $0x18] sm:$0xff] %v2281
        %2298 = vst [vmem:[%s210 + $0x20] sm:$0xff] %v2282
        %2299 = vst [vmem:[%s210 + $0x28] sm:$0xff] %v2283
        %2300 = vst [vmem:[%s210 + $0x30] sm:$0xff] %v2284
        %2301 = vst [vmem:[%s210 + $0x38] sm:$0xff] %v2285
        %2302 = vst [vmem:[%s210 + $0x40] sm:$0xff] %v2286
        %2303 = vst [vmem:[%s210 + $0x48] sm:$0xff] %v2287
        %2304 = vst [vmem:[%s210 + $0x50] sm:$0xff] %v2288
        %2305 = vst [vmem:[%s210 + $0x58] sm:$0xff] %v2289
        %2306 = vst [vmem:[%s210 + $0x60] sm:$0xff] %v2290
        %2307 = vst [vmem:[%s210 + $0x68] sm:$0xff] %v2291
        %2308 = vst [vmem:[%s210 + $0x70] sm:$0xff] %v2292
        %2309 = vst [vmem:[%s210 + $0x78] sm:$0xff] %v2293
        %s2310 = sand.u32 %s126, 1
        %s2311 = scalar_lea.sflag [#allocation3], %s2310
        %s2312 = sand.u32 %s126, 1
        %s2313 = smul.addr %s2312, 128
        %s2314 = scalar_lea.vmem [#allocation2], %s2313
        // Predicated region
        $region33: #{tpu_custom_call.1} parent=31 // pred_check
          %p2315 = pneg %p136
        $region34: #{tpu_custom_call.1} parent=31 // pred_check_branch
          %2317 = sbr.rel (%p2315) target = $region36
        $region35: #{tpu_custom_call.1} parent=31 // pred_region
          %s2318 = smul.u32 8, %s24
          %2320 = vsyncadd %s2311, 0
          %s2321 = smul.addr %s2318, 2
          %s2322 = sadd.s32 %s23, %s2321
          %s2323 = smul.addr %s22, 32
          %s2324 = sadd.s32 %s2322, %s2323
          %s2325 = smul.addr %s2324, 8
          %s2326 = scalar_lea.hbm %s3, %s2325
          %s2327 = sshll.u32 %s2314, 4
          %s2328 = int_to_ptr.vmem [resolvable:$true] %s2327
          %s2329 = sshll.u32 %s2326, 4
          %s2330 = int_to_ptr.hbm [resolvable:$true] %s2329
          %2335 = dma.vmem_to_hbm [thread:$0]  %s2328, 2048, %s2330, %s2311, 128, 128, 8
        $region36: #{tpu_custom_call.1} parent=31 // pred_fallthru
          _
      $region32: #{tpu_custom_call.1} parent=5 // pred_fallthru
        _
      %p2336 = scmp.le.s32.totalorder 2, %s12
      // Predicated region
      $region37: #{tpu_custom_call.1} parent=5 // pred_check
        %p2337 = pneg %p2336
      $region38: #{tpu_custom_call.1} parent=5 // pred_check_branch
        %2339 = sbr.rel (%p2337) target = $region40
      $region39: #{tpu_custom_call.1} parent=5 // pred_region
        %s2340 = ssub.s32 %s12, 2
        // Predicated region
        $region41: #{tpu_custom_call.1} parent=39 // pred_check
          %p2341 = pneg %p142
        $region42: #{tpu_custom_call.1} parent=39 // pred_check_branch
          %2343 = sbr.rel (%p2341) target = $region44
        $region43: #{tpu_custom_call.1} parent=39 // pred_region
          %s2344 = sand.u32 %s127, 1
          %s2345 = scalar_lea.sflag [#allocation3], %s2344
          %s2346 = sand.u32 %s127, 1
          %s2347 = smul.addr %s2346, 128
          %s2348 = scalar_lea.vmem [#allocation2], %s2347
          %2350 = dma.done %s2345, 2048
        $region44: #{tpu_custom_call.1} parent=39 // pred_fallthru
          _
      $region40: #{tpu_custom_call.1} parent=5 // pred_fallthru
        _
    $region6: #{tpu_custom_call.1} parent=1 // loop_footer
      %s16 = sadd.s32 1, %s12
    $region7: #{tpu_custom_call.1} parent=1 // loop_footer_branch
      %11 = sbr.rel target = $region3
    $region8: #{tpu_custom_call.1} parent=1 // loop_exit
      _
    %2351 = vsyncpa [#allocation3], 1
    %s2352 = scalar_lea.sflag [#allocation3], 1
    %2353 = vsyncpa %s2352, 1

</llo_original>
